<compile_context>
chip_gen: v5e
topology: v5e:2x2
jax: 0.10.0
libtpu: 0.0.40
codegen_flags: <defaults>
</compile_context>

<pallas_src>
import functools
import math

import jax
import jax.numpy as jnp
from jax import lax
from jax.experimental import pallas as pl
from jax.experimental.pallas import tpu as pltpu

_LOG2E = 1.4426950408889634


# ------------------------------- helpers ------------------------------------ #

def _round_up(x, m):
    return (x + m - 1) // m * m


def _pad2(x, rows, cols):
    return jnp.pad(x, ((0, rows - x.shape[0]), (0, cols - x.shape[1])))


def _split_heads(x, n_heads, d_k):
    """[N, H*d_k] -> [H, N, d_k] via static lane slices + leading-dim stack."""
    return jnp.stack([x[:, h * d_k:(h + 1) * d_k] for h in range(n_heads)], axis=0)


def _vmem_limit_bytes():
    cap = 128 * 1024 * 1024
    try:
        info = pltpu.get_tpu_info()
        cap = getattr(info, "vmem_capacity_bytes", cap) or cap
    except Exception:
        pass
    # ~3/4 of physical VMEM: 48 MiB on v7x (64 MiB/TC), 96 MiB on v5e/v6e.
    return (3 * cap) // 4


def _pick_dst_tile(requested, n_dst):
    # multiples of 32 keep int8 adj blocks tile-aligned.
    t = min(requested, _round_up(n_dst, 32))
    # keep >= 2 dst tiles when possible so the "parallel" dst grid axis can be
    # split across both TensorCores on v7x.
    while t > 128 and -(-n_dst // t) < 2:
        t = max(128, _round_up(t // 2, 32))
    return t


def _pick_src_tile(requested, n_src):
    return min(requested, _round_up(n_src, 128))


# ------------------------------- kernels ------------------------------------ #

def dst_projection_kernel(x_ref, w_ref, out_ref):
    # Fused k|q|v projection for one dst row-tile: bf16 MXU, f32 accumulation.
    out_ref[...] = jnp.dot(
        x_ref[...].astype(jnp.bfloat16), w_ref[...].astype(jnp.bfloat16),
        preferred_element_type=jnp.float32)


def src_projection_kernel(x_ref, w_ref, kT_ref, v_hm_ref, *, n_heads, d_k):
    # Fused k|v projection + head-major relayout, done ONCE per source row tile
    # (hoisted out of the attention hot loop).
    d = n_heads * d_k
    proj = jnp.dot(
        x_ref[...].astype(jnp.bfloat16), w_ref[...].astype(jnp.bfloat16),
        preferred_element_type=jnp.float32)                   # [Tns, 2D] = [k | v]
    kT_ref[...] = proj[:, :d].T.astype(jnp.bfloat16)          # [D, Tns] lane-dense N_src
    v_hm_ref[...] = _split_heads(proj[:, d:2 * d], n_heads, d_k).astype(jnp.bfloat16)


def mean_encoder_kernel(h_src_ref, h_dst_ref, adj_ref, out_ref, acc_ref, deg_ref):
    j = pl.program_id(1)

    @pl.when(j == 0)
    def _init():
        acc_ref[...] = jnp.zeros_like(acc_ref)
        deg_ref[...] = jnp.zeros_like(deg_ref)

    adj_f = adj_ref[...].astype(jnp.float32)                  # int8 counts -> f32 (exact)
    # fn.copy_u('h_src','m') + fn.sum('m','h_neigh'), summed over sub-metapaths.
    acc_ref[...] += jnp.dot(adj_f.astype(jnp.bfloat16), h_src_ref[...],
                            preferred_element_type=jnp.float32)
    deg_ref[...] += jnp.sum(adj_f, axis=-1, keepdims=True)

    @pl.when(j == pl.num_programs(1) - 1)
    def _finalize():
        inv = pl.reciprocal(deg_ref[...] + 1.0, approx=False)
        out_ref[...] = ((acc_ref[...] + h_dst_ref[...]) * inv).astype(out_ref.dtype)


def attention_encoder_kernel(dst_ref, k_src_ref, v_src_ref, adj_ref, out_ref,
                             q_sc, m_sc, l_sc, acc_sc, *, n_heads, d_k, use_v):
    j = pl.program_id(1)
    d = n_heads * d_k
    # Base-2 online softmax: fold log2(e)/sqrt(d_k) into one score scale so both
    # p and alpha use exp2 (saves a VALU multiply per [H,Tnd,Tns] element/step).
    score_scale = jnp.float32(_LOG2E / math.sqrt(d_k))

    @pl.when(j == 0)
    def _init():
        dst = dst_ref[...]                                    # [Tnd, 3D] = [k | q | v]
        k3 = _split_heads(dst[:, :d], n_heads, d_k)           # f32 [H, Tnd, dk]
        q3 = _split_heads(dst[:, d:2 * d], n_heads, d_k)
        v3 = _split_heads(dst[:, 2 * d:], n_heads, d_k)
        q_sc[...] = q3.astype(jnp.bfloat16)
        # Self-loop edge (add_edges(u, u)) seeds the online-softmax state.
        m_sc[...] = jnp.sum(q3 * k3, axis=-1, keepdims=True) * score_scale
        l_sc[...] = jnp.ones_like(l_sc)                       # exp2(self - self) = 1
        acc_sc[...] = v3                                      # 1 * v_dst

    # [H,Tnd,dk] x [H,dk,Tns] -> [H,Tnd,Tns]; k_src is pre-relayouted head-major,
    # so this is a canonical batched MXU matmul with a lane-dense N (=Tns) dim.
    scores = lax.dot_general(
        q_sc[...], k_src_ref[...],
        dimension_numbers=(((2,), (1,)), ((0,), (0,))),
        preferred_element_type=jnp.float32) * score_scale

    adj = adj_ref[...].astype(jnp.float32)                    # int8 counts -> f32
    scores = jnp.where((adj > 0.0)[None, :, :], scores, jnp.float32(-1e30))

    # Online (flash-style) softmax update across the N_src grid axis.
    m_prev = m_sc[...]
    m_new = jnp.maximum(m_prev, jnp.max(scores, axis=-1, keepdims=True))
    alpha = jnp.exp2(m_prev - m_new)
    p = adj[None, :, :] * jnp.exp2(scores - m_new)            # edge-multiplicity aware
    l_sc[...] = alpha * l_sc[...] + jnp.sum(p, axis=-1, keepdims=True)

    pv = lax.dot_general(
        p.astype(jnp.bfloat16), v_src_ref[...],
        dimension_numbers=(((2,), (1,)), ((0,), (0,))),
        preferred_element_type=jnp.float32)                   # [H, Tnd, dk]
    acc_sc[...] = alpha * acc_sc[...] + pv
    m_sc[...] = m_new

    @pl.when(j == pl.num_programs(1) - 1)
    def _finalize():
        out3 = acc_sc[...] * pl.reciprocal(l_sc[...], approx=True)
        # Assemble one lane-dense [Tnd, D] block and store it once (no per-head
        # 16-lane masked stores).
        out2d = jnp.concatenate([out3[h] for h in range(n_heads)], axis=-1)
        if use_v:
            out2d = jnp.maximum(out2d, 0.0)                   # F.relu
        out_ref[...] = out2d.astype(out_ref.dtype)


# ------------------------------- wrappers ------------------------------------ #

def _project_dst(x, w, *, tile_rows):
    n, din = x.shape
    dout = w.shape[1]
    return pl.pallas_call(
        dst_projection_kernel,
        out_shape=jax.ShapeDtypeStruct((n, dout), jnp.float32),
        grid_spec=pltpu.PrefetchScalarGridSpec(
            num_scalar_prefetch=0,
            grid=(n // tile_rows,),
            in_specs=[pl.BlockSpec((tile_rows, din), lambda i: (i, 0)),
                      pl.BlockSpec((din, dout), lambda i: (0, 0))],
            out_specs=pl.BlockSpec((tile_rows, dout), lambda i: (i, 0))),
        compiler_params=pltpu.CompilerParams(
            dimension_semantics=("parallel",),
            vmem_limit_bytes=_vmem_limit_bytes()),
    )(x, w)


def _project_src(x, w, *, tile_rows, n_heads, d_k):
    n, din = x.shape
    d = n_heads * d_k
    kernel = functools.partial(src_projection_kernel, n_heads=n_heads, d_k=d_k)
    return pl.pallas_call(
        kernel,
        out_shape=(jax.ShapeDtypeStruct((d, n), jnp.bfloat16),              # k^T
                   jax.ShapeDtypeStruct((n_heads, n, d_k), jnp.bfloat16)),  # v head-split
        grid_spec=pltpu.PrefetchScalarGridSpec(
            num_scalar_prefetch=0,
            grid=(n // tile_rows,),
            in_specs=[pl.BlockSpec((tile_rows, din), lambda i: (i, 0)),
                      pl.BlockSpec((din, 2 * d), lambda i: (0, 0))],
            out_specs=(pl.BlockSpec((d, tile_rows), lambda i: (0, i)),
                       pl.BlockSpec((n_heads, tile_rows, d_k), lambda i: (0, i, 0)))),
        compiler_params=pltpu.CompilerParams(
            dimension_semantics=("parallel",),
            vmem_limit_bytes=_vmem_limit_bytes()),
    )(x, w)


def metapath_context_encoder_mean(h_src, h_dst, adj, *, tile_nd=512, tile_ns=1024):
    n_dst, d = h_dst.shape
    n_src = h_src.shape[0]
    tile_nd = _pick_dst_tile(tile_nd, n_dst)
    tile_ns = _pick_src_tile(tile_ns, n_src)
    ndp = _round_up(n_dst, tile_nd)
    nsp = _round_up(n_src, tile_ns)

    h_src_p = _pad2(h_src, nsp, d).astype(jnp.bfloat16)
    h_dst_p = _pad2(h_dst, ndp, d)
    # int8 edge multiplicities: exact, 1 byte/entry (largest HBM stream).
    # TODO(synk): widen to int16/f32 if summed sub-metapath counts can exceed 127.
    adj_p = _pad2(adj, ndp, nsp).astype(jnp.int8)

    out = pl.pallas_call(
        mean_encoder_kernel,
        out_shape=jax.ShapeDtypeStruct((ndp, d), jnp.float32),
        grid_spec=pltpu.PrefetchScalarGridSpec(
            num_scalar_prefetch=0,
            grid=(ndp // tile_nd, nsp // tile_ns),
            in_specs=[pl.BlockSpec((tile_ns, d), lambda i, j: (j, 0)),
                      pl.BlockSpec((tile_nd, d), lambda i, j: (i, 0)),
                      pl.BlockSpec((tile_nd, tile_ns), lambda i, j: (i, j))],
            out_specs=pl.BlockSpec((tile_nd, d), lambda i, j: (i, 0)),
            scratch_shapes=[pltpu.VMEM((tile_nd, d), jnp.float32),
                            pltpu.VMEM((tile_nd, 1), jnp.float32)]),
        compiler_params=pltpu.CompilerParams(
            dimension_semantics=("parallel", "arbitrary"),
            vmem_limit_bytes=_vmem_limit_bytes()),
    )(h_src_p, h_dst_p, adj_p)
    return out[:n_dst]


def metapath_context_encoder_attention(h_src, h_dst, adj, wk, wq, wv=None,
                                       *, n_heads=8, use_v=False,
                                       tile_nd=256, tile_ns=512):
    n_dst, d = h_dst.shape
    n_src = h_src.shape[0]
    assert d % n_heads == 0
    d_k = d // n_heads
    if use_v:
        assert wv is not None

    tile_nd = _pick_dst_tile(tile_nd, n_dst)
    tile_ns = _pick_src_tile(tile_ns, n_src)
    ndp = _round_up(n_dst, tile_nd)
    nsp = _round_up(n_src, tile_ns)

    h_src_p = _pad2(h_src, nsp, d)
    h_dst_p = _pad2(h_dst, ndp, d)
    # int8 edge multiplicities (see mean wrapper note).
    adj_p = _pad2(adj, ndp, nsp).astype(jnp.int8)

    # When use_v=False the module uses raw features as v; an identity "weight"
    # keeps a single fused-projection code path (bf16 round-trip only).
    wv_eff = wv if use_v else jnp.eye(d, dtype=wk.dtype)
    w_dst = jnp.concatenate([wk, wq, wv_eff], axis=1)         # [D, 3D] -> k | q | v
    w_src = jnp.concatenate([wk, wv_eff], axis=1)             # [D, 2D] -> k | v

    # Pre-passes: every feature projected exactly once, and the head-major
    # relayouts happen here, not in the per-(i,j) hot loop. No wrapper slicing
    # of the projection results (no extra HBM copies between pallas_calls).
    dst_all = _project_dst(h_dst_p, w_dst, tile_rows=tile_nd)             # [ndp, 3D] f32
    k_srcT, v_src_hm = _project_src(h_src_p, w_src, tile_rows=tile_ns,
                                    n_heads=n_heads, d_k=d_k)
    k_src_hm = k_srcT.reshape(n_heads, d_k, nsp)                          # free reshape

    kernel = functools.partial(attention_encoder_kernel,
                               n_heads=n_heads, d_k=d_k, use_v=use_v)
    out = pl.pallas_call(
        kernel,
        out_shape=jax.ShapeDtypeStruct((ndp, d), jnp.float32),
        grid_spec=pltpu.PrefetchScalarGridSpec(
            num_scalar_prefetch=0,
            grid=(ndp // tile_nd, nsp // tile_ns),
            in_specs=[
                pl.BlockSpec((tile_nd, 3 * d), lambda i, j: (i, 0)),            # k|q|v dst
                pl.BlockSpec((n_heads, d_k, tile_ns), lambda i, j: (0, 0, j)),  # k_src hm
                pl.BlockSpec((n_heads, tile_ns, d_k), lambda i, j: (0, j, 0)),  # v_src hm
                pl.BlockSpec((tile_nd, tile_ns), lambda i, j: (i, j)),          # adj int8
            ],
            out_specs=pl.BlockSpec((tile_nd, d), lambda i, j: (i, 0)),
            scratch_shapes=[pltpu.VMEM((n_heads, tile_nd, d_k), jnp.bfloat16),   # q
                            pltpu.VMEM((n_heads, tile_nd, 1), jnp.float32),      # m
                            pltpu.VMEM((n_heads, tile_nd, 1), jnp.float32),      # l
                            pltpu.VMEM((n_heads, tile_nd, d_k), jnp.float32)]),  # acc
        compiler_params=pltpu.CompilerParams(
            dimension_semantics=("parallel", "arbitrary"),
            vmem_limit_bytes=_vmem_limit_bytes()),
    )(dst_all, k_src_hm, v_src_hm, adj_p)
    return out[:n_dst]


# ----------------------------- pure-JAX references -------------------------- #

def mean_ref(h_src, h_dst, adj):
    h_neigh = adj @ h_src
    num_neigh = adj.sum(-1, keepdims=True)
    return (h_neigh + h_dst) / (num_neigh + 1.0)


def attention_ref(h_src, h_dst, adj, wk, wq, wv, n_heads, use_v):
    n_dst, d = h_dst.shape
    d_k = d // n_heads
    k_src = (h_src @ wk).reshape(-1, n_heads, d_k)
    k_dst = (h_dst @ wk).reshape(-1, n_heads, d_k)
    q_dst = (h_dst @ wq).reshape(-1, n_heads, d_k)
    v_src = ((h_src @ wv) if use_v else h_src).reshape(-1, n_heads, d_k)
    v_dst = ((h_dst @ wv) if use_v else h_dst).reshape(-1, n_heads, d_k)
    scale = 1.0 / math.sqrt(d_k)
    scores = jnp.einsum('dhk,shk->dhs', q_dst, k_src) * scale
    self_score = jnp.sum(q_dst * k_dst, -1) * scale
    mask = (adj > 0)[:, None, :]
    scores_m = jnp.where(mask, scores, -1e30)
    m = jnp.maximum(scores_m.max(-1), self_score)
    e_edges = adj[:, None, :] * jnp.exp(scores_m - m[..., None])
    e_self = jnp.exp(self_score - m)
    denom = e_edges.sum(-1) + e_self
    a_edges = e_edges / denom[..., None]
    a_self = (e_self / denom)[..., None]
    out = jnp.einsum('dhs,shk->dhk', a_edges, v_src) + a_self * v_dst
    out = out.reshape(n_dst, d)
    if use_v:
        out = jax.nn.relu(out)
    return out


# ----------------------------------- main ------------------------------------ #

if __name__ == "__main__":
    key = jax.random.PRNGKey(0)
    k1, k2, k3, k4, k5, k6 = jax.random.split(key, 6)

    N_SRC, N_DST, D, N_HEADS = 640, 320, 128, 8
    # Small-shape tiles: (3, 3) grid with padding on both axes, so init / multi-
    # step online-softmax / finalize paths are all exercised. Production
    # defaults (256x512 attention, 512x1024 mean) kick in when tiles are omitted.
    TILE_ND, TILE_NS = 128, 256

    h_src = jax.random.normal(k1, (N_SRC, D), dtype=jnp.float32)
    h_dst = jax.random.normal(k2, (N_DST, D), dtype=jnp.float32)
    # edge multiplicities in {0, 1, 2} (sum over sub-metapaths)
    u = jax.random.uniform(k3, (N_DST, N_SRC))
    adj = (u < 0.15).astype(jnp.float32) + (u < 0.03).astype(jnp.float32)

    # nn.Linear(in_dim, in_dim, bias=False), pre-transposed to [D_in, D_out]
    wk = jax.random.normal(k4, (D, D), dtype=jnp.float32) * 0.1
    wq = jax.random.normal(k5, (D, D), dtype=jnp.float32) * 0.1
    wv = jax.random.normal(k6, (D, D), dtype=jnp.float32) * 0.1

    # encoder_type='mean'
    out_mean = metapath_context_encoder_mean(h_src, h_dst, adj,
                                             tile_nd=TILE_ND, tile_ns=TILE_NS)
    jax.block_until_ready(out_mean)
    assert jnp.allclose(out_mean, mean_ref(h_src, h_dst, adj),
                        rtol=5e-2, atol=5e-2), "mean mismatch"

    # encoder_type='attention', use_v=False (v = raw features)
    out_att = metapath_context_encoder_attention(
        h_src, h_dst, adj, wk, wq, None, n_heads=N_HEADS, use_v=False,
        tile_nd=TILE_ND, tile_ns=TILE_NS)
    jax.block_until_ready(out_att)
    assert jnp.allclose(out_att,
                        attention_ref(h_src, h_dst, adj, wk, wq, wv, N_HEADS, False),
                        rtol=5e-2, atol=5e-2), "attention mismatch"

    # encoder_type='attention', use_v=True (v_linear + ReLU)
    out_att_v = metapath_context_encoder_attention(
        h_src, h_dst, adj, wk, wq, wv, n_heads=N_HEADS, use_v=True,
        tile_nd=TILE_ND, tile_ns=TILE_NS)
    jax.block_until_ready(out_att_v)
    assert jnp.allclose(out_att_v,
                        attention_ref(h_src, h_dst, adj, wk, wq, wv, N_HEADS, True),
                        rtol=5e-2, atol=5e-2), "attention(use_v) mismatch"

    print("KERNEL_OK")
</pallas_src>

<mosaic_0001>
module attributes {stable_mosaic.version = 11 : i64} {
  func.func @mean_encoder_kernel(%arg0: i32, %arg1: i32, %arg2: memref<256x128xbf16, #tpu.memory_space<vmem>>, %arg3: memref<128x128xf32, #tpu.memory_space<vmem>>, %arg4: memref<128x256xi8, #tpu.memory_space<vmem>>, %arg5: memref<128x128xf32, #tpu.memory_space<vmem>>, %arg6: memref<128x128xf32, #tpu.memory_space<vmem>>, %arg7: memref<128x1xf32, #tpu.memory_space<vmem>>) attributes {dimension_semantics = [#tpu.dimension_semantics<parallel>, #tpu.dimension_semantics<arbitrary>], iteration_bounds = array<i64: 3, 3>, scalar_prefetch = 0 : i64, scratch_operands = 2 : i64, tpu.core_type = #tpu.core_type<tc>, window_params = [{transform_indices = @transform_0, window_bounds = array<i64: 256, 128>}, {transform_indices = @transform_1, window_bounds = array<i64: 128, 128>}, {transform_indices = @transform_2, window_bounds = array<i64: 128, 256>}, {transform_indices = @transform_3, window_bounds = array<i64: 128, 128>}]} {
    %c0_i32 = arith.constant 0 : i32
    %0 = arith.cmpi eq, %arg1, %c0_i32 : i32
    %1 = arith.extui %0 : i1 to i32
    %c0_i32_0 = arith.constant 0 : i32
    %2 = arith.cmpi ne, %1, %c0_i32_0 : i32
    scf.if %2 {
      %cst_14 = arith.constant 0.000000e+00 : f32
      %19 = vector.broadcast %cst_14 : f32 to vector<128x128xf32>
      %c0_15 = arith.constant 0 : index
      %c0_16 = arith.constant 0 : index
      %20 = vector.load %arg6[%c0_15, %c0_16] : memref<128x128xf32, #tpu.memory_space<vmem>>, vector<128x128xf32>
      tpu.vector_store %arg6[%c0_15, %c0_16], %19 {strides = array<i32>} : memref<128x128xf32, #tpu.memory_space<vmem>>, vector<128x128xf32>,
      %cst_17 = arith.constant 0.000000e+00 : f32
      %21 = vector.broadcast %cst_17 : f32 to vector<128x1xf32>
      %c0_18 = arith.constant 0 : index
      %c0_19 = arith.constant 0 : index
      %22 = vector.load %arg7[%c0_18, %c0_19] : memref<128x1xf32, #tpu.memory_space<vmem>>, vector<128x1xf32>
      tpu.vector_store %arg7[%c0_18, %c0_19], %21 {strides = array<i32>} : memref<128x1xf32, #tpu.memory_space<vmem>>, vector<128x1xf32>,
    } else {
    }
    %c0 = arith.constant 0 : index
    %c0_1 = arith.constant 0 : index
    %3 = vector.load %arg4[%c0, %c0_1] : memref<128x256xi8, #tpu.memory_space<vmem>>, vector<128x256xi8>
    %4 = arith.sitofp %3 : vector<128x256xi8> to vector<128x256xf32>
    %c0_2 = arith.constant 0 : index
    %c0_3 = arith.constant 0 : index
    %5 = vector.load %arg6[%c0_2, %c0_3] : memref<128x128xf32, #tpu.memory_space<vmem>>, vector<128x128xf32>
    %6 = arith.truncf %4 : vector<128x256xf32> to vector<128x256xbf16>
    %c0_4 = arith.constant 0 : index
    %c0_5 = arith.constant 0 : index
    %7 = vector.load %arg2[%c0_4, %c0_5] : memref<256x128xbf16, #tpu.memory_space<vmem>>, vector<256x128xbf16>
    %cst = arith.constant dense<0.000000e+00> : vector<128x128xf32>
    %8 = tpu.matmul %6, %7, %cst {dimension_numbers = #tpu.dot_dimension_numbers<[1], [0], [0], [1], [0, 0, 1, 1], [], []>} : vector<128x256xbf16>, vector<256x128xbf16>, vector<128x128xf32> -> vector<128x128xf32>
    %9 = arith.addf %5, %8 : vector<128x128xf32>
    %c0_6 = arith.constant 0 : index
    %c0_7 = arith.constant 0 : index
    %10 = vector.load %arg6[%c0_6, %c0_7] : memref<128x128xf32, #tpu.memory_space<vmem>>, vector<128x128xf32>
    tpu.vector_store %arg6[%c0_6, %c0_7], %9 {strides = array<i32>} : memref<128x128xf32, #tpu.memory_space<vmem>>, vector<128x128xf32>,
    %c0_8 = arith.constant 0 : index
    %c0_9 = arith.constant 0 : index
    %11 = vector.load %arg7[%c0_8, %c0_9] : memref<128x1xf32, #tpu.memory_space<vmem>>, vector<128x1xf32>
    %cst_10 = arith.constant dense<0.000000e+00> : vector<128xf32>
    %12 = vector.multi_reduction <add>, %4, %cst_10 [1] : vector<128x256xf32> to vector<128xf32>
    %13 = vector.shape_cast %12 : vector<128xf32> to vector<128x1xf32>
    %14 = arith.addf %11, %13 : vector<128x1xf32>
    %c0_11 = arith.constant 0 : index
    %c0_12 = arith.constant 0 : index
    %15 = vector.load %arg7[%c0_11, %c0_12] : memref<128x1xf32, #tpu.memory_space<vmem>>, vector<128x1xf32>
    tpu.vector_store %arg7[%c0_11, %c0_12], %14 {strides = array<i32>} : memref<128x1xf32, #tpu.memory_space<vmem>>, vector<128x1xf32>,
    %c2_i32 = arith.constant 2 : i32
    %16 = arith.cmpi eq, %arg1, %c2_i32 : i32
    %17 = arith.extui %16 : i1 to i32
    %c0_i32_13 = arith.constant 0 : i32
    %18 = arith.cmpi ne, %17, %c0_i32_13 : i32
    scf.if %18 {
      %c0_14 = arith.constant 0 : index
      %c0_15 = arith.constant 0 : index
      %19 = vector.load %arg7[%c0_14, %c0_15] : memref<128x1xf32, #tpu.memory_space<vmem>>, vector<128x1xf32>
      %cst_16 = arith.constant 1.000000e+00 : f32
      %20 = vector.broadcast %cst_16 : f32 to vector<128x1xf32>
      %21 = arith.addf %19, %20 : vector<128x1xf32>
      %22 = tpu.reciprocal %21 : vector<128x1xf32> -> vector<128x1xf32>
      %c0_17 = arith.constant 0 : index
      %c0_18 = arith.constant 0 : index
      %23 = vector.load %arg6[%c0_17, %c0_18] : memref<128x128xf32, #tpu.memory_space<vmem>>, vector<128x128xf32>
      %c0_19 = arith.constant 0 : index
      %c0_20 = arith.constant 0 : index
      %24 = vector.load %arg3[%c0_19, %c0_20] : memref<128x128xf32, #tpu.memory_space<vmem>>, vector<128x128xf32>
      %25 = arith.addf %23, %24 : vector<128x128xf32>
      %26 = vector.broadcast %22 : vector<128x1xf32> to vector<128x128xf32>
      %27 = arith.mulf %25, %26 : vector<128x128xf32>
      %c0_21 = arith.constant 0 : index
      %c0_22 = arith.constant 0 : index
      %28 = vector.load %arg5[%c0_21, %c0_22] : memref<128x128xf32, #tpu.memory_space<vmem>>, vector<128x128xf32>
      tpu.vector_store %arg5[%c0_21, %c0_22], %27 {strides = array<i32>} : memref<128x128xf32, #tpu.memory_space<vmem>>, vector<128x128xf32>,
    } else {
    }
    return
  }
  func.func @transform_0(%arg0: i32, %arg1: i32) -> (i32, i32) {
    %c0_i32 = arith.constant 0 : i32
    %c0_i32_0 = arith.constant 0 : i32
    return %arg1, %c0_i32 : i32, i32
  }
  func.func @transform_1(%arg0: i32, %arg1: i32) -> (i32, i32) {
    %c0_i32 = arith.constant 0 : i32
    %c0_i32_0 = arith.constant 0 : i32
    return %arg0, %c0_i32 : i32, i32
  }
  func.func @transform_2(%arg0: i32, %arg1: i32) -> (i32, i32) {
    %c0_i32 = arith.constant 0 : i32
    return %arg0, %arg1 : i32, i32
  }
  func.func @transform_3(%arg0: i32, %arg1: i32) -> (i32, i32) {
    %c0_i32 = arith.constant 0 : i32
    %c0_i32_0 = arith.constant 0 : i32
    return %arg0, %c0_i32 : i32, i32
  }
}

</mosaic_0001>

<llo_original>
// kernel: tpu_custom_call.1
$region0: #{tpu_custom_call.1}
  #allocation0 [shape = 'u32[]', space=smem, size = 0x4, offset = 0x4, fixed_abs, tag = 'smem constant byte address 0x4 - core index']
  #allocation1 [shape = 'u32[72,128]{1,0:T(1,128)}', space=vmem, size = 0x9000, scoped, tag = 'internal scratch']
  #allocation2 [shape = 'f32[128,128]{1,0:T(8,128)}', space=vmem, size = 0x10000, scoped, tag = 'scratch operand']
  #allocation3 [shape = 'f32[128,1]{1,0:T(8,128)}', space=vmem, size = 0x10000, scoped, tag = 'scratch operand']
  %s0 = inlined_call_operand.hbm [shape: bf16[768,128], index: 0, kind: input, shape index: {}]
  %s1 = inlined_call_operand.hbm [shape: f32[384,128], index: 1, kind: input, shape index: {}]
  %s2 = inlined_call_operand.hbm [shape: s8[384,768], index: 2, kind: input, shape index: {}]
  %s3 = inlined_call_operand.hbm [shape: f32[384,128], index: 3, kind: output, shape index: {}]
  %s4 = sld [smem:[#allocation0]]
  $region65: #{tpu_custom_call.1} parent=0
    _
  %s6 = ssub.s32 1, %s4
  %s7 = scalar_select 0, %s6, %s4
  $region1: #{tpu_custom_call.1} parent=0
    #allocation4 [shape = 'u8[131072]{0}', space=vmem, size = 0x20000, scoped, tag = 'input window, operand 0']
    #allocation5 [shape = 's32[2]{0}', space=sflag, size = 0x8, scoped, tag = 'scoped memory for tpu_custom_call.1']
    #allocation6 [shape = 's32[2]{0}', space=sflag, size = 0x8, scoped, tag = 'scoped memory for tpu_custom_call.1']
    #allocation7 [shape = 'u8[131072]{0}', space=vmem, size = 0x20000, scoped, tag = 'input window, operand 1']
    #allocation8 [shape = 's32[2]{0}', space=sflag, size = 0x8, scoped, tag = 'scoped memory for tpu_custom_call.1']
    #allocation9 [shape = 'u8[65536]{0}', space=vmem, size = 0x10000, scoped, tag = 'input window, operand 2']
    #allocation10 [shape = 'u8[131072]{0}', space=vmem, size = 0x20000, scoped, tag = 'output window, operand 0']
    %8 = vsyncpa [#allocation5], 0
    %s9 = scalar_lea.sflag [#allocation5], 1
    %10 = vsyncpa %s9, 0
    %11 = vsyncpa [#allocation8], 0
    %s12 = scalar_lea.sflag [#allocation8], 1
    %13 = vsyncpa %s12, 0
    %14 = vsyncpa [#allocation6], 0
    %s15 = scalar_lea.sflag [#allocation6], 1
    %16 = vsyncpa %s15, 0
    loop: start=0, step=1, limit=11
    $region2: #{tpu_custom_call.1} parent=1 // loop_pre_header
      _
    $region3: #{tpu_custom_call.1} parent=1 // loop_header
      %s18 = sphi 0, %s22
      %p19 = scmp.ge.s32.totalorder %s18, 11
      %s25 = sphi 0, %s37
      %s26 = sphi 0, %s33
      %s27 = sphi 0, %s25
      %s28 = sphi 0, %s26
      %s29 = sphi 0, %s27
      %s30 = sphi 0, %s28
      %s40 = sphi 0, %s42
      %s43 = sphi 0, %s40
      %s44 = sphi 0, %s43
      %s60 = sphi 0, %s44
      %s66 = sphi 0, %s68
      %s69 = sphi 0, %s66
      %s70 = sphi 0, %s69
      %s86 = sphi 0, %s70
      %s94 = sphi 0, %s96
      %s97 = sphi 0, %s94
      %s98 = sphi 0, %s97
      %s114 = sphi 0, %s98
      %s120 = sphi 0, %s122
      %s123 = sphi 0, %s120
      %s124 = sphi 0, %s123
      %s140 = sphi 0, %s124
    $region4: #{tpu_custom_call.1} parent=1 // loop_header_branch
      %21 = sbr.rel (%p19) target = $region8
    $region5: #{tpu_custom_call.1} parent=1 // loop_body
      %s23 = ssub.s32 %s18, 1
      %s24 = ssub.s32 %s18, 2
      %s31 = sadd.s32 1, %s26
      %p32 = scmp.ge.s32.totalorder %s31, 3
      %s33 = scalar_select %p32, 0, %s31
      %s34 = sadd.s32 1, %s25
      %s35 = scalar_select %p32, %s34, %s25
      %p36 = scmp.ge.s32.totalorder %s35, 3
      %s37 = scalar_select %p36, 0, %s35
      %s38 = ssub.s32 %s26, %s33
      %p39 = scmp.eq.s32.totalorder %s38, 0
      %s41 = sadd.s32 %s40, 1
      %s42 = scalar_select %p39, %s40, %s41
      %p45 = pneg %p39
      %p46 = scmp.eq.s32.totalorder %s18, 8
      %p47 = por %p45, %p46
      %p48 = scmp.ne.s32.totalorder %s40, %s43
      %p49 = scmp.eq.s32.totalorder %s18, 0
      %p50 = por %p48, %p49
      %p51 = scmp.ne.s32.totalorder %s40, %s43
      %p52 = scmp.eq.s32.totalorder %s23, 8
      %p53 = por %p51, %p52
      %p54 = scmp.ne.s32.totalorder %s43, %s44
      %p55 = scmp.eq.s32.totalorder %s23, 0
      %p56 = por %p54, %p55
      %p57 = scmp.ne.s32.totalorder %s43, %s44
      %p58 = scmp.eq.s32.totalorder %s24, 8
      %p59 = por %p57, %p58
      %p61 = scmp.ne.s32.totalorder %s44, %s60
      %p62 = scmp.eq.s32.totalorder %s24, 0
      %p63 = por %p61, %p62
      %s64 = ssub.s32 %s25, %s37
      %p65 = scmp.eq.s32.totalorder %s64, 0
      %s67 = sadd.s32 %s66, 1
      %s68 = scalar_select %p65, %s66, %s67
      %p71 = pneg %p65
      %p72 = scmp.eq.s32.totalorder %s18, 8
      %p73 = por %p71, %p72
      %p74 = scmp.ne.s32.totalorder %s66, %s69
      %p75 = scmp.eq.s32.totalorder %s18, 0
      %p76 = por %p74, %p75
      %p77 = scmp.ne.s32.totalorder %s66, %s69
      %p78 = scmp.eq.s32.totalorder %s23, 8
      %p79 = por %p77, %p78
      %p80 = scmp.ne.s32.totalorder %s69, %s70
      %p81 = scmp.eq.s32.totalorder %s23, 0
      %p82 = por %p80, %p81
      %p83 = scmp.ne.s32.totalorder %s69, %s70
      %p84 = scmp.eq.s32.totalorder %s24, 8
      %p85 = por %p83, %p84
      %p87 = scmp.ne.s32.totalorder %s70, %s86
      %p88 = scmp.eq.s32.totalorder %s24, 0
      %p89 = por %p87, %p88
      %s90 = ssub.s32 %s25, %s37
      %s91 = ssub.s32 %s26, %s33
      %s92 = sor.u32 %s90, %s91
      %p93 = scmp.eq.s32.totalorder %s92, 0
      %s95 = sadd.s32 %s94, 1
      %s96 = scalar_select %p93, %s94, %s95
      %p99 = pneg %p93
      %p100 = scmp.eq.s32.totalorder %s18, 8
      %p101 = por %p99, %p100
      %p102 = scmp.ne.s32.totalorder %s94, %s97
      %p103 = scmp.eq.s32.totalorder %s18, 0
      %p104 = por %p102, %p103
      %p105 = scmp.ne.s32.totalorder %s94, %s97
      %p106 = scmp.eq.s32.totalorder %s23, 8
      %p107 = por %p105, %p106
      %p108 = scmp.ne.s32.totalorder %s97, %s98
      %p109 = scmp.eq.s32.totalorder %s23, 0
      %p110 = por %p108, %p109
      %p111 = scmp.ne.s32.totalorder %s97, %s98
      %p112 = scmp.eq.s32.totalorder %s24, 8
      %p113 = por %p111, %p112
      %p115 = scmp.ne.s32.totalorder %s98, %s114
      %p116 = scmp.eq.s32.totalorder %s24, 0
      %p117 = por %p115, %p116
      %s118 = ssub.s32 %s25, %s37
      %p119 = scmp.eq.s32.totalorder %s118, 0
      %s121 = sadd.s32 %s120, 1
      %s122 = scalar_select %p119, %s120, %s121
      %p125 = pneg %p119
      %p126 = scmp.eq.s32.totalorder %s18, 8
      %p127 = por %p125, %p126
      %p128 = scmp.ne.s32.totalorder %s120, %s123
      %p129 = scmp.eq.s32.totalorder %s18, 0
      %p130 = por %p128, %p129
      %p131 = scmp.ne.s32.totalorder %s120, %s123
      %p132 = scmp.eq.s32.totalorder %s23, 8
      %p133 = por %p131, %p132
      %p134 = scmp.ne.s32.totalorder %s123, %s124
      %p135 = scmp.eq.s32.totalorder %s23, 0
      %p136 = por %p134, %p135
      %p137 = scmp.ne.s32.totalorder %s123, %s124
      %p138 = scmp.eq.s32.totalorder %s24, 8
      %p139 = por %p137, %p138
      %p141 = scmp.ne.s32.totalorder %s124, %s140
      %p142 = scmp.eq.s32.totalorder %s24, 0
      %p143 = por %p141, %p142
      %p144 = scmp.le.s32.totalorder 1, %s18
      %p145 = scmp.lt.s32.totalorder %s18, 10
      %p146 = pnand %p144, %p145
      %p147 = pneg %p146
      // Predicated region
      $region9: #{tpu_custom_call.1} parent=5 // pred_check
        _
      $region10: #{tpu_custom_call.1} parent=5 // pred_check_branch
        %149 = sbr.rel (%p146) target = $region12
      $region11: #{tpu_custom_call.1} parent=5 // pred_region
        %s150 = ssub.s32 %s18, 1
      $region12: #{tpu_custom_call.1} parent=5 // pred_fallthru
        _
      %p151 = scmp.lt.s32.totalorder %s18, 9
      // Predicated region
      $region13: #{tpu_custom_call.1} parent=5 // pred_check
        %p152 = pneg %p151
      $region14: #{tpu_custom_call.1} parent=5 // pred_check_branch
        %154 = sbr.rel (%p152) target = $region16
      $region15: #{tpu_custom_call.1} parent=5 // pred_region
        // Predicated region
        $region17: #{tpu_custom_call.1} parent=15 // pred_check
          %p155 = pneg %p50
        $region18: #{tpu_custom_call.1} parent=15 // pred_check_branch
          %157 = sbr.rel (%p155) target = $region20
        $region19: #{tpu_custom_call.1} parent=15 // pred_region
          %s158 = sand.u32 %s40, 1
          %s159 = scalar_lea.sflag [#allocation5], %s158
          %s160 = sand.u32 %s40, 1
          %s161 = smul.addr %s160, 128
          %s162 = scalar_lea.vmem [#allocation4], %s161
          %s163 = smul.u32 32, %s26
          %165 = vsyncadd %s159, 0
          %s166 = smul.addr %s163, 4
          %s167 = scalar_lea.hbm %s0, %s166
          %s168 = sshll.u32 %s167, 4
          %s169 = int_to_ptr.hbm [resolvable:$true] %s168
          %s170 = sshll.u32 %s162, 4
          %s171 = int_to_ptr.vmem [resolvable:$true] %s170
          %176 = dma.hbm_to_vmem [thread:$0]  %s169, 2048, %s171, %s159, 64, 64, 4
        $region20: #{tpu_custom_call.1} parent=15 // pred_fallthru
          _
        // Predicated region
        $region21: #{tpu_custom_call.1} parent=15 // pred_check
          %p177 = pneg %p76
        $region22: #{tpu_custom_call.1} parent=15 // pred_check_branch
          %179 = sbr.rel (%p177) target = $region24
        $region23: #{tpu_custom_call.1} parent=15 // pred_region
          %s180 = sand.u32 %s18, 1
          %s181 = scalar_lea.sflag [#allocation8], %s180
          %s182 = sand.u32 %s66, 1
          %s183 = smul.addr %s182, 128
          %s184 = scalar_lea.vmem [#allocation7], %s183
          %s185 = smul.u32 16, %s25
          %187 = vsyncadd %s181, 0
          %s188 = smul.addr %s185, 8
          %s189 = scalar_lea.hbm %s1, %s188
          %s190 = sshll.u32 %s189, 4
          %s191 = int_to_ptr.hbm [resolvable:$true] %s190
          %s192 = sshll.u32 %s184, 4
          %s193 = int_to_ptr.vmem [resolvable:$true] %s192
          %198 = dma.hbm_to_vmem [thread:$0]  %s191, 2048, %s193, %s181, 128, 128, 8
        $region24: #{tpu_custom_call.1} parent=15 // pred_fallthru
          _
        // Predicated region
        $region25: #{tpu_custom_call.1} parent=15 // pred_check
          %p199 = pneg %p104
        $region26: #{tpu_custom_call.1} parent=15 // pred_check_branch
          %201 = sbr.rel (%p199) target = $region28
        $region27: #{tpu_custom_call.1} parent=15 // pred_region
          %s202 = sand.u32 %s18, 1
          %s203 = scalar_lea.sflag [#allocation8], %s202
          %s204 = sand.u32 %s94, 1
          %s205 = smul.addr %s204, 64
          %s206 = scalar_lea.vmem [#allocation9], %s205
          %s207 = smul.u32 4, %s25
          %s208 = smul.u32 2, %s26
          %210 = vsyncadd %s203, 0
          %s211 = smul.addr %s207, 6
          %s212 = sadd.s32 %s208, %s211
          %s213 = smul.addr %s212, 8
          %s214 = scalar_lea.hbm %s2, %s213
          %s215 = sshll.u32 %s214, 4
          %s216 = int_to_ptr.hbm [resolvable:$true] %s215
          %s217 = sshll.u32 %s206, 4
          %s218 = int_to_ptr.vmem [resolvable:$true] %s217
          %223 = dma.hbm_to_vmem [thread:$0]  %s216, 1024, %s218, %s203, 768, 256, 16
        $region28: #{tpu_custom_call.1} parent=15 // pred_fallthru
          _
      $region16: #{tpu_custom_call.1} parent=5 // pred_fallthru
        _
      %p224 = scmp.le.s32.totalorder 1, %s18
      %p225 = scmp.lt.s32.totalorder %s18, 10
      %p226 = pnand %p224, %p225
      %p227 = pneg %p226
      // Predicated region
      $region29: #{tpu_custom_call.1} parent=5 // pred_check
        _
      $region30: #{tpu_custom_call.1} parent=5 // pred_check_branch
        %229 = sbr.rel (%p226) target = $region32
      $region31: #{tpu_custom_call.1} parent=5 // pred_region
        %s230 = ssub.s32 %s18, 1
        %s231 = sand.u32 %s43, 1
        %s232 = scalar_lea.sflag [#allocation5], %s231
        %s233 = sand.u32 %s43, 1
        %s234 = smul.addr %s233, 128
        %s235 = scalar_lea.vmem [#allocation4], %s234
        // Predicated region
        $region33: #{tpu_custom_call.1} parent=31 // pred_check
          %p236 = pneg %p56
        $region34: #{tpu_custom_call.1} parent=31 // pred_check_branch
          %238 = sbr.rel (%p236) target = $region36
        $region35: #{tpu_custom_call.1} parent=31 // pred_region
          %240 = dma.done %s232, 2048
        $region36: #{tpu_custom_call.1} parent=31 // pred_fallthru
          _
        %s241 = sand.u32 %s23, 1
        %s242 = scalar_lea.sflag [#allocation8], %s241
        %s243 = sand.u32 %s69, 1
        %s244 = smul.addr %s243, 128
        %s245 = scalar_lea.vmem [#allocation7], %s244
        // Predicated region
        $region37: #{tpu_custom_call.1} parent=31 // pred_check
          %p246 = pneg %p82
        $region38: #{tpu_custom_call.1} parent=31 // pred_check_branch
          %248 = sbr.rel (%p246) target = $region40
        $region39: #{tpu_custom_call.1} parent=31 // pred_region
          %250 = dma.done %s242, 2048
        $region40: #{tpu_custom_call.1} parent=31 // pred_fallthru
          _
        %s251 = sand.u32 %s23, 1
        %s252 = scalar_lea.sflag [#allocation8], %s251
        %s253 = sand.u32 %s97, 1
        %s254 = smul.addr %s253, 64
        %s255 = scalar_lea.vmem [#allocation9], %s254
        // Predicated region
        $region41: #{tpu_custom_call.1} parent=31 // pred_check
          %p256 = pneg %p110
        $region42: #{tpu_custom_call.1} parent=31 // pred_check_branch
          %258 = sbr.rel (%p256) target = $region44
        $region43: #{tpu_custom_call.1} parent=31 // pred_region
          %260 = dma.done %s252, 1024
        $region44: #{tpu_custom_call.1} parent=31 // pred_fallthru
          _
        %s261 = sand.u32 %s43, 1
        %s262 = scalar_lea.sflag [#allocation5], %s261
        %s263 = sand.u32 %s43, 1
        %s264 = smul.addr %s263, 128
        %s265 = scalar_lea.vmem [#allocation4], %s264
        %p266 = pneg %p56
        %p267 = pneg %p53
        %s268 = sand.u32 %s23, 1
        %s269 = scalar_lea.sflag [#allocation8], %s268
        %s270 = sand.u32 %s69, 1
        %s271 = smul.addr %s270, 128
        %s272 = scalar_lea.vmem [#allocation7], %s271
        %p273 = pneg %p82
        %p274 = pneg %p79
        %s275 = sand.u32 %s23, 1
        %s276 = scalar_lea.sflag [#allocation8], %s275
        %s277 = sand.u32 %s97, 1
        %s278 = smul.addr %s277, 64
        %s279 = scalar_lea.vmem [#allocation9], %s278
        %p280 = pneg %p110
        %p281 = pneg %p107
        %p282 = pneg %p136
        %p283 = pneg %p133
        %s284 = sand.u32 %s123, 1
        %s285 = scalar_lea.sflag [#allocation6], %s284
        %s286 = sand.u32 %s123, 1
        %s287 = smul.addr %s286, 128
        %s288 = scalar_lea.vmem [#allocation10], %s287
        %s289 = smul.u32 32, %s28
        %s290 = smul.u32 16, %s27
        %s291 = smul.u32 4, %s27
        %s292 = smul.u32 2, %s28
        %s293 = smul.u32 16, %s27
        %p294 = scmp.eq.s32.totalorder %s28, 0
        // Predicated region
        $region45: #{tpu_custom_call.1} parent=31 // pred_check
          %p295 = pneg %p294
        $region46: #{tpu_custom_call.1} parent=31 // pred_check_branch
          %297 = sbr.rel (%p295) target = $region48
        $region47: #{tpu_custom_call.1} parent=31 // pred_region
          %298 = vst [vmem:[#allocation2] sm:$0xff] 0.0
          %299 = vst [vmem:[#allocation2 + $0x8] sm:$0xff] 0.0
          %300 = vst [vmem:[#allocation2 + $0x10] sm:$0xff] 0.0
          %301 = vst [vmem:[#allocation2 + $0x18] sm:$0xff] 0.0
          %302 = vst [vmem:[#allocation2 + $0x20] sm:$0xff] 0.0
          %303 = vst [vmem:[#allocation2 + $0x28] sm:$0xff] 0.0
          %304 = vst [vmem:[#allocation2 + $0x30] sm:$0xff] 0.0
          %305 = vst [vmem:[#allocation2 + $0x38] sm:$0xff] 0.0
          %306 = vst [vmem:[#allocation2 + $0x40] sm:$0xff] 0.0
          %307 = vst [vmem:[#allocation2 + $0x48] sm:$0xff] 0.0
          %308 = vst [vmem:[#allocation2 + $0x50] sm:$0xff] 0.0
          %309 = vst [vmem:[#allocation2 + $0x58] sm:$0xff] 0.0
          %310 = vst [vmem:[#allocation2 + $0x60] sm:$0xff] 0.0
          %311 = vst [vmem:[#allocation2 + $0x68] sm:$0xff] 0.0
          %312 = vst [vmem:[#allocation2 + $0x70] sm:$0xff] 0.0
          %313 = vst [vmem:[#allocation2 + $0x78] sm:$0xff] 0.0
          %vm314 = vcmask 7168
          %315 = vst.msk [vmem:[#allocation3] sm:$0xff] %vm314, 0.0
          %316 = vst.msk [vmem:[#allocation3 + $0x8] sm:$0xff] %vm314, 0.0
          %317 = vst.msk [vmem:[#allocation3 + $0x10] sm:$0xff] %vm314, 0.0
          %318 = vst.msk [vmem:[#allocation3 + $0x18] sm:$0xff] %vm314, 0.0
          %319 = vst.msk [vmem:[#allocation3 + $0x20] sm:$0xff] %vm314, 0.0
          %320 = vst.msk [vmem:[#allocation3 + $0x28] sm:$0xff] %vm314, 0.0
          %321 = vst.msk [vmem:[#allocation3 + $0x30] sm:$0xff] %vm314, 0.0
          %322 = vst.msk [vmem:[#allocation3 + $0x38] sm:$0xff] %vm314, 0.0
          %323 = vst.msk [vmem:[#allocation3 + $0x40] sm:$0xff] %vm314, 0.0
          %324 = vst.msk [vmem:[#allocation3 + $0x48] sm:$0xff] %vm314, 0.0
          %325 = vst.msk [vmem:[#allocation3 + $0x50] sm:$0xff] %vm314, 0.0
          %326 = vst.msk [vmem:[#allocation3 + $0x58] sm:$0xff] %vm314, 0.0
          %327 = vst.msk [vmem:[#allocation3 + $0x60] sm:$0xff] %vm314, 0.0
          %328 = vst.msk [vmem:[#allocation3 + $0x68] sm:$0xff] %vm314, 0.0
          %329 = vst.msk [vmem:[#allocation3 + $0x70] sm:$0xff] %vm314, 0.0
          %330 = vst.msk [vmem:[#allocation3 + $0x78] sm:$0xff] %vm314, 0.0
        $region48: #{tpu_custom_call.1} parent=31 // pred_fallthru
          _
        %v331 = vld [vmem:[%s255] sm:$0xff]
        %v332 = vld [vmem:[%s255 + $0x8] sm:$0xff]
        %v333 = vld [vmem:[%s255 + $0x10] sm:$0xff]
        %v334 = vld [vmem:[%s255 + $0x18] sm:$0xff]
        %v335 = vld [vmem:[%s255 + $0x20] sm:$0xff]
        %v336 = vld [vmem:[%s255 + $0x28] sm:$0xff]
        %v337 = vld [vmem:[%s255 + $0x30] sm:$0xff]
        %v338 = vld [vmem:[%s255 + $0x38] sm:$0xff]
        %v339 = vunpack.c.0.s8 %v331
        %v340 = vunpack.c.0.s8 %v332
        %v341 = vunpack.c.1.s8 %v331
        %v342 = vunpack.c.1.s8 %v332
        %v343 = vunpack.c.2.s8 %v331
        %v344 = vunpack.c.2.s8 %v332
        %v345 = vunpack.c.3.s8 %v331
        %v346 = vunpack.c.3.s8 %v332
        %v347 = vunpack.c.0.s8 %v333
        %v348 = vunpack.c.0.s8 %v334
        %v349 = vunpack.c.1.s8 %v333
        %v350 = vunpack.c.1.s8 %v334
        %v351 = vunpack.c.2.s8 %v333
        %v352 = vunpack.c.2.s8 %v334
        %v353 = vunpack.c.3.s8 %v333
        %v354 = vunpack.c.3.s8 %v334
        %v355 = vunpack.c.0.s8 %v335
        %v356 = vunpack.c.0.s8 %v336
        %v357 = vunpack.c.1.s8 %v335
        %v358 = vunpack.c.1.s8 %v336
        %v359 = vunpack.c.2.s8 %v335
        %v360 = vunpack.c.2.s8 %v336
        %v361 = vunpack.c.3.s8 %v335
        %v362 = vunpack.c.3.s8 %v336
        %v363 = vunpack.c.0.s8 %v337
        %v364 = vunpack.c.0.s8 %v338
        %v365 = vunpack.c.1.s8 %v337
        %v366 = vunpack.c.1.s8 %v338
        %v367 = vunpack.c.2.s8 %v337
        %v368 = vunpack.c.2.s8 %v338
        %v369 = vunpack.c.3.s8 %v337
        %v370 = vunpack.c.3.s8 %v338
        %v371 = vcvt.s32.f32 %v339
        %v372 = vcvt.s32.f32 %v340
        %v373 = vcvt.s32.f32 %v341
        %v374 = vcvt.s32.f32 %v342
        %v375 = vcvt.s32.f32 %v343
        %v376 = vcvt.s32.f32 %v344
        %v377 = vcvt.s32.f32 %v345
        %v378 = vcvt.s32.f32 %v346
        %v379 = vcvt.s32.f32 %v347
        %v380 = vcvt.s32.f32 %v348
        %v381 = vcvt.s32.f32 %v349
        %v382 = vcvt.s32.f32 %v350
        %v383 = vcvt.s32.f32 %v351
        %v384 = vcvt.s32.f32 %v352
        %v385 = vcvt.s32.f32 %v353
        %v386 = vcvt.s32.f32 %v354
        %v387 = vcvt.s32.f32 %v355
        %v388 = vcvt.s32.f32 %v356
        %v389 = vcvt.s32.f32 %v357
        %v390 = vcvt.s32.f32 %v358
        %v391 = vcvt.s32.f32 %v359
        %v392 = vcvt.s32.f32 %v360
        %v393 = vcvt.s32.f32 %v361
        %v394 = vcvt.s32.f32 %v362
        %v395 = vcvt.s32.f32 %v363
        %v396 = vcvt.s32.f32 %v364
        %v397 = vcvt.s32.f32 %v365
        %v398 = vcvt.s32.f32 %v366
        %v399 = vcvt.s32.f32 %v367
        %v400 = vcvt.s32.f32 %v368
        %v401 = vcvt.s32.f32 %v369
        %v402 = vcvt.s32.f32 %v370
        %v403 = vld [vmem:[#allocation2] sm:$0xff]
        %v404 = vld [vmem:[#allocation2 + $0x8] sm:$0xff]
        %v405 = vld [vmem:[#allocation2 + $0x10] sm:$0xff]
        %v406 = vld [vmem:[#allocation2 + $0x18] sm:$0xff]
        %v407 = vld [vmem:[#allocation2 + $0x20] sm:$0xff]
        %v408 = vld [vmem:[#allocation2 + $0x28] sm:$0xff]
        %v409 = vld [vmem:[#allocation2 + $0x30] sm:$0xff]
        %v410 = vld [vmem:[#allocation2 + $0x38] sm:$0xff]
        %v411 = vld [vmem:[#allocation2 + $0x40] sm:$0xff]
        %v412 = vld [vmem:[#allocation2 + $0x48] sm:$0xff]
        %v413 = vld [vmem:[#allocation2 + $0x50] sm:$0xff]
        %v414 = vld [vmem:[#allocation2 + $0x58] sm:$0xff]
        %v415 = vld [vmem:[#allocation2 + $0x60] sm:$0xff]
        %v416 = vld [vmem:[#allocation2 + $0x68] sm:$0xff]
        %v417 = vld [vmem:[#allocation2 + $0x70] sm:$0xff]
        %v418 = vld [vmem:[#allocation2 + $0x78] sm:$0xff]
        %v419 = vpack.c.bf16 %v373, %v371
        %v420 = vpack.c.bf16 %v374, %v372
        %v421 = vpack.c.bf16 %v377, %v375
        %v422 = vpack.c.bf16 %v378, %v376
        %v423 = vpack.c.bf16 %v381, %v379
        %v424 = vpack.c.bf16 %v382, %v380
        %v425 = vpack.c.bf16 %v385, %v383
        %v426 = vpack.c.bf16 %v386, %v384
        %v427 = vpack.c.bf16 %v389, %v387
        %v428 = vpack.c.bf16 %v390, %v388
        %v429 = vpack.c.bf16 %v393, %v391
        %v430 = vpack.c.bf16 %v394, %v392
        %v431 = vpack.c.bf16 %v397, %v395
        %v432 = vpack.c.bf16 %v398, %v396
        %v433 = vpack.c.bf16 %v401, %v399
        %v434 = vpack.c.bf16 %v402, %v400
        %v435 = vld [vmem:[%s235] sm:$0xf]
        %v436 = vld [vmem:[%s235 + $0x4] sm:$0xf]
        %v437 = vld [vmem:[%s235 + $0x8] sm:$0xf]
        %v438 = vld [vmem:[%s235 + $0xc] sm:$0xf]
        %v439 = vld [vmem:[%s235 + $0x10] sm:$0xf]
        %v440 = vld [vmem:[%s235 + $0x14] sm:$0xf]
        %v441 = vld [vmem:[%s235 + $0x18] sm:$0xf]
        %v442 = vld [vmem:[%s235 + $0x1c] sm:$0xf]
        %v443 = vld [vmem:[%s235 + $0x20] sm:$0xf]
        %v444 = vld [vmem:[%s235 + $0x24] sm:$0xf]
        %v445 = vld [vmem:[%s235 + $0x28] sm:$0xf]
        %v446 = vld [vmem:[%s235 + $0x2c] sm:$0xf]
        %v447 = vld [vmem:[%s235 + $0x30] sm:$0xf]
        %v448 = vld [vmem:[%s235 + $0x34] sm:$0xf]
        %v449 = vld [vmem:[%s235 + $0x38] sm:$0xf]
        %v450 = vld [vmem:[%s235 + $0x3c] sm:$0xf]
        %v451 = vld [vmem:[%s235 + $0x40] sm:$0xf]
        %v452 = vld [vmem:[%s235 + $0x44] sm:$0xf]
        %v453 = vld [vmem:[%s235 + $0x48] sm:$0xf]
        %v454 = vld [vmem:[%s235 + $0x4c] sm:$0xf]
        %v455 = vld [vmem:[%s235 + $0x50] sm:$0xf]
        %v456 = vld [vmem:[%s235 + $0x54] sm:$0xf]
        %v457 = vld [vmem:[%s235 + $0x58] sm:$0xf]
        %v458 = vld [vmem:[%s235 + $0x5c] sm:$0xf]
        %v459 = vld [vmem:[%s235 + $0x60] sm:$0xf]
        %v460 = vld [vmem:[%s235 + $0x64] sm:$0xf]
        %v461 = vld [vmem:[%s235 + $0x68] sm:$0xf]
        %v462 = vld [vmem:[%s235 + $0x6c] sm:$0xf]
        %v463 = vld [vmem:[%s235 + $0x70] sm:$0xf]
        %v464 = vld [vmem:[%s235 + $0x74] sm:$0xf]
        %v465 = vld [vmem:[%s235 + $0x78] sm:$0xf]
        %v466 = vld [vmem:[%s235 + $0x7c] sm:$0xf]
        %v499 = vunpack.c.l.b16 %v435
        %v500 = vunpack.c.l.b16 %v436
        %v501 = vunpack.c.l.b16 %v437
        %v502 = vunpack.c.l.b16 %v438
        %v503 = vunpack.c.l.b16 %v439
        %v504 = vunpack.c.l.b16 %v440
        %v505 = vunpack.c.l.b16 %v441
        %v506 = vunpack.c.l.b16 %v442
        %v507 = vunpack.c.l.b16 %v443
        %v508 = vunpack.c.l.b16 %v444
        %v509 = vunpack.c.l.b16 %v445
        %v510 = vunpack.c.l.b16 %v446
        %v511 = vunpack.c.l.b16 %v447
        %v512 = vunpack.c.l.b16 %v448
        %v513 = vunpack.c.l.b16 %v449
        %v514 = vunpack.c.l.b16 %v450
        %v515 = vunpack.c.l.b16 %v451
        %v516 = vunpack.c.l.b16 %v452
        %v517 = vunpack.c.l.b16 %v453
        %v518 = vunpack.c.l.b16 %v454
        %v519 = vunpack.c.l.b16 %v455
        %v520 = vunpack.c.l.b16 %v456
        %v521 = vunpack.c.l.b16 %v457
        %v522 = vunpack.c.l.b16 %v458
        %v523 = vunpack.c.l.b16 %v459
        %v524 = vunpack.c.l.b16 %v460
        %v525 = vunpack.c.l.b16 %v461
        %v526 = vunpack.c.l.b16 %v462
        %v527 = vunpack.c.l.b16 %v463
        %v528 = vunpack.c.l.b16 %v464
        %v529 = vunpack.c.l.b16 %v465
        %v530 = vunpack.c.l.b16 %v466
        %v531 = vpack.c.b16 %v500, %v499
        %v532 = vpack.c.b16 %v502, %v501
        %v533 = vpack.c.b16 %v504, %v503
        %v534 = vpack.c.b16 %v506, %v505
        %v535 = vpack.c.b16 %v508, %v507
        %v536 = vpack.c.b16 %v510, %v509
        %v537 = vpack.c.b16 %v512, %v511
        %v538 = vpack.c.b16 %v514, %v513
        %v539 = vpack.c.b16 %v516, %v515
        %v540 = vpack.c.b16 %v518, %v517
        %v541 = vpack.c.b16 %v520, %v519
        %v542 = vpack.c.b16 %v522, %v521
        %v543 = vpack.c.b16 %v524, %v523
        %v544 = vpack.c.b16 %v526, %v525
        %v545 = vpack.c.b16 %v528, %v527
        %v546 = vpack.c.b16 %v530, %v529
        %563 = vmatpush.bf16.msra.mxu0 %v538
        %564 = vmatpush.bf16.msra.mxu0 %v537
        %565 = vmatpush.bf16.msra.mxu0 %v536
        %566 = vmatpush.bf16.msra.mxu0 %v535
        %567 = vmatpush.bf16.msra.mxu0 %v534
        %568 = vmatpush.bf16.msra.mxu0 %v533
        %569 = vmatpush.bf16.msra.mxu0 %v532
        %570 = vmatpush.bf16.msra.mxu0 %v531
        %571 = vmatmul.bf16.gmra.mxu0 %v419
        %v572 = vpop.f32.mrf.mxu0
        %v573 = vadd.f32 0.0, %v572
        %v574 = vpop.f32.mrf.mxu0
        %v575 = vadd.f32 0.0, %v574
        %576 = vmatmul.bf16.gmra.mxu0 %v421
        %v577 = vpop.f32.mrf.mxu0
        %v578 = vadd.f32 0.0, %v577
        %v579 = vpop.f32.mrf.mxu0
        %v580 = vadd.f32 0.0, %v579
        %581 = vmatmul.bf16.gmra.mxu0 %v423
        %v582 = vpop.f32.mrf.mxu0
        %v583 = vadd.f32 0.0, %v582
        %v584 = vpop.f32.mrf.mxu0
        %v585 = vadd.f32 0.0, %v584
        %586 = vmatmul.bf16.gmra.mxu0 %v425
        %v587 = vpop.f32.mrf.mxu0
        %v588 = vadd.f32 0.0, %v587
        %v589 = vpop.f32.mrf.mxu0
        %v590 = vadd.f32 0.0, %v589
        %591 = vmatmul.bf16.gmra.mxu0 %v427
        %v592 = vpop.f32.mrf.mxu0
        %v593 = vadd.f32 0.0, %v592
        %v594 = vpop.f32.mrf.mxu0
        %v595 = vadd.f32 0.0, %v594
        %596 = vmatmul.bf16.gmra.mxu0 %v429
        %v597 = vpop.f32.mrf.mxu0
        %v598 = vadd.f32 0.0, %v597
        %v599 = vpop.f32.mrf.mxu0
        %v600 = vadd.f32 0.0, %v599
        %601 = vmatmul.bf16.gmra.mxu0 %v431
        %v602 = vpop.f32.mrf.mxu0
        %v603 = vadd.f32 0.0, %v602
        %v604 = vpop.f32.mrf.mxu0
        %v605 = vadd.f32 0.0, %v604
        %606 = vmatmul.bf16.gmra.mxu0 %v433
        %v607 = vpop.f32.mrf.mxu0
        %v608 = vadd.f32 0.0, %v607
        %v609 = vpop.f32.mrf.mxu0
        %v610 = vadd.f32 0.0, %v609
        %611 = vdwg.mxu0
        %612 = vmatpush.bf16.msra.mxu0 %v546
        %613 = vmatpush.bf16.msra.mxu0 %v545
        %614 = vmatpush.bf16.msra.mxu0 %v544
        %615 = vmatpush.bf16.msra.mxu0 %v543
        %616 = vmatpush.bf16.msra.mxu0 %v542
        %617 = vmatpush.bf16.msra.mxu0 %v541
        %618 = vmatpush.bf16.msra.mxu0 %v540
        %619 = vmatpush.bf16.msra.mxu0 %v539
        %620 = vmatmul.bf16.gmra.mxu0 %v420
        %v621 = vpop.f32.mrf.mxu0
        %v622 = vadd.f32 %v573, %v621
        %v623 = vpop.f32.mrf.mxu0
        %v624 = vadd.f32 %v575, %v623
        %625 = vmatmul.bf16.gmra.mxu0 %v422
        %v626 = vpop.f32.mrf.mxu0
        %v627 = vadd.f32 %v578, %v626
        %v628 = vpop.f32.mrf.mxu0
        %v629 = vadd.f32 %v580, %v628
        %630 = vmatmul.bf16.gmra.mxu0 %v424
        %v631 = vpop.f32.mrf.mxu0
        %v632 = vadd.f32 %v583, %v631
        %v633 = vpop.f32.mrf.mxu0
        %v634 = vadd.f32 %v585, %v633
        %635 = vmatmul.bf16.gmra.mxu0 %v426
        %v636 = vpop.f32.mrf.mxu0
        %v637 = vadd.f32 %v588, %v636
        %v638 = vpop.f32.mrf.mxu0
        %v639 = vadd.f32 %v590, %v638
        %640 = vmatmul.bf16.gmra.mxu0 %v428
        %v641 = vpop.f32.mrf.mxu0
        %v642 = vadd.f32 %v593, %v641
        %v643 = vpop.f32.mrf.mxu0
        %v644 = vadd.f32 %v595, %v643
        %645 = vmatmul.bf16.gmra.mxu0 %v430
        %v646 = vpop.f32.mrf.mxu0
        %v647 = vadd.f32 %v598, %v646
        %v648 = vpop.f32.mrf.mxu0
        %v649 = vadd.f32 %v600, %v648
        %650 = vmatmul.bf16.gmra.mxu0 %v432
        %v651 = vpop.f32.mrf.mxu0
        %v652 = vadd.f32 %v603, %v651
        %v653 = vpop.f32.mrf.mxu0
        %v654 = vadd.f32 %v605, %v653
        %655 = vmatmul.bf16.gmra.mxu0 %v434
        %v656 = vpop.f32.mrf.mxu0
        %v657 = vadd.f32 %v608, %v656
        %v658 = vpop.f32.mrf.mxu0
        %v659 = vadd.f32 %v610, %v658
        %660 = vdwg.mxu0
        %v661 = vadd.f32 %v403, %v622
        %v662 = vadd.f32 %v404, %v624
        %v663 = vadd.f32 %v405, %v627
        %v664 = vadd.f32 %v406, %v629
        %v665 = vadd.f32 %v407, %v632
        %v666 = vadd.f32 %v408, %v634
        %v667 = vadd.f32 %v409, %v637
        %v668 = vadd.f32 %v410, %v639
        %v669 = vadd.f32 %v411, %v642
        %v670 = vadd.f32 %v412, %v644
        %v671 = vadd.f32 %v413, %v647
        %v672 = vadd.f32 %v414, %v649
        %v673 = vadd.f32 %v415, %v652
        %v674 = vadd.f32 %v416, %v654
        %v675 = vadd.f32 %v417, %v657
        %v676 = vadd.f32 %v418, %v659
        %677 = vst [vmem:[#allocation2] sm:$0xff] %v661
        %678 = vst [vmem:[#allocation2 + $0x8] sm:$0xff] %v662
        %679 = vst [vmem:[#allocation2 + $0x10] sm:$0xff] %v663
        %680 = vst [vmem:[#allocation2 + $0x18] sm:$0xff] %v664
        %681 = vst [vmem:[#allocation2 + $0x20] sm:$0xff] %v665
        %682 = vst [vmem:[#allocation2 + $0x28] sm:$0xff] %v666
        %683 = vst [vmem:[#allocation2 + $0x30] sm:$0xff] %v667
        %684 = vst [vmem:[#allocation2 + $0x38] sm:$0xff] %v668
        %685 = vst [vmem:[#allocation2 + $0x40] sm:$0xff] %v669
        %686 = vst [vmem:[#allocation2 + $0x48] sm:$0xff] %v670
        %687 = vst [vmem:[#allocation2 + $0x50] sm:$0xff] %v671
        %688 = vst [vmem:[#allocation2 + $0x58] sm:$0xff] %v672
        %689 = vst [vmem:[#allocation2 + $0x60] sm:$0xff] %v673
        %690 = vst [vmem:[#allocation2 + $0x68] sm:$0xff] %v674
        %691 = vst [vmem:[#allocation2 + $0x70] sm:$0xff] %v675
        %692 = vst [vmem:[#allocation2 + $0x78] sm:$0xff] %v676
        %v693 = vld [vmem:[#allocation3] sm:$0xff]
        %v694 = vld [vmem:[#allocation3 + $0x8] sm:$0xff]
        %v695 = vld [vmem:[#allocation3 + $0x10] sm:$0xff]
        %v696 = vld [vmem:[#allocation3 + $0x18] sm:$0xff]
        %v697 = vld [vmem:[#allocation3 + $0x20] sm:$0xff]
        %v698 = vld [vmem:[#allocation3 + $0x28] sm:$0xff]
        %v699 = vld [vmem:[#allocation3 + $0x30] sm:$0xff]
        %v700 = vld [vmem:[#allocation3 + $0x38] sm:$0xff]
        %v701 = vld [vmem:[#allocation3 + $0x40] sm:$0xff]
        %v702 = vld [vmem:[#allocation3 + $0x48] sm:$0xff]
        %v703 = vld [vmem:[#allocation3 + $0x50] sm:$0xff]
        %v704 = vld [vmem:[#allocation3 + $0x58] sm:$0xff]
        %v705 = vld [vmem:[#allocation3 + $0x60] sm:$0xff]
        %v706 = vld [vmem:[#allocation3 + $0x68] sm:$0xff]
        %v707 = vld [vmem:[#allocation3 + $0x70] sm:$0xff]
        %v708 = vld [vmem:[#allocation3 + $0x78] sm:$0xff]
        %v709 = vadd.f32 %v371, %v372
        %710 = vadd.xlane.f32.xlu0 %v709
        %v711 = vpop.xlane.xlu0 %710
        %v712 = vadd.f32 %v373, %v374
        %713 = vadd.xlane.f32.xlu0 %v712
        %v714 = vpop.xlane.xlu0 %713
        %v715 = vadd.f32 %v375, %v376
        %716 = vadd.xlane.f32.xlu0 %v715
        %v717 = vpop.xlane.xlu0 %716
        %v718 = vadd.f32 %v377, %v378
        %719 = vadd.xlane.f32.xlu0 %v718
        %v720 = vpop.xlane.xlu0 %719
        %v721 = vadd.f32 %v379, %v380
        %722 = vadd.xlane.f32.xlu0 %v721
        %v723 = vpop.xlane.xlu0 %722
        %v724 = vadd.f32 %v381, %v382
        %725 = vadd.xlane.f32.xlu0 %v724
        %v726 = vpop.xlane.xlu0 %725
        %v727 = vadd.f32 %v383, %v384
        %728 = vadd.xlane.f32.xlu0 %v727
        %v729 = vpop.xlane.xlu0 %728
        %v730 = vadd.f32 %v385, %v386
        %731 = vadd.xlane.f32.xlu0 %v730
        %v732 = vpop.xlane.xlu0 %731
        %v733 = vadd.f32 %v387, %v388
        %734 = vadd.xlane.f32.xlu0 %v733
        %v735 = vpop.xlane.xlu0 %734
        %v736 = vadd.f32 %v389, %v390
        %737 = vadd.xlane.f32.xlu0 %v736
        %v738 = vpop.xlane.xlu0 %737
        %v739 = vadd.f32 %v391, %v392
        %740 = vadd.xlane.f32.xlu0 %v739
        %v741 = vpop.xlane.xlu0 %740
        %v742 = vadd.f32 %v393, %v394
        %743 = vadd.xlane.f32.xlu0 %v742
        %v744 = vpop.xlane.xlu0 %743
        %v745 = vadd.f32 %v395, %v396
        %746 = vadd.xlane.f32.xlu0 %v745
        %v747 = vpop.xlane.xlu0 %746
        %v748 = vadd.f32 %v397, %v398
        %749 = vadd.xlane.f32.xlu0 %v748
        %v750 = vpop.xlane.xlu0 %749
        %v751 = vadd.f32 %v399, %v400
        %752 = vadd.xlane.f32.xlu0 %v751
        %v753 = vpop.xlane.xlu0 %752
        %v754 = vadd.f32 %v401, %v402
        %755 = vadd.xlane.f32.xlu0 %v754
        %v756 = vpop.xlane.xlu0 %755
        %v757 = vadd.f32 %v693, %v711
        %v758 = vadd.f32 %v694, %v714
        %v759 = vadd.f32 %v695, %v717
        %v760 = vadd.f32 %v696, %v720
        %v761 = vadd.f32 %v697, %v723
        %v762 = vadd.f32 %v698, %v726
        %v763 = vadd.f32 %v699, %v729
        %v764 = vadd.f32 %v700, %v732
        %v765 = vadd.f32 %v701, %v735
        %v766 = vadd.f32 %v702, %v738
        %v767 = vadd.f32 %v703, %v741
        %v768 = vadd.f32 %v704, %v744
        %v769 = vadd.f32 %v705, %v747
        %v770 = vadd.f32 %v706, %v750
        %v771 = vadd.f32 %v707, %v753
        %v772 = vadd.f32 %v708, %v756
        %vm773 = vcmask 7168
        %774 = vst.msk [vmem:[#allocation3] sm:$0xff] %vm773, %v757
        %775 = vst.msk [vmem:[#allocation3 + $0x8] sm:$0xff] %vm773, %v758
        %776 = vst.msk [vmem:[#allocation3 + $0x10] sm:$0xff] %vm773, %v759
        %777 = vst.msk [vmem:[#allocation3 + $0x18] sm:$0xff] %vm773, %v760
        %778 = vst.msk [vmem:[#allocation3 + $0x20] sm:$0xff] %vm773, %v761
        %779 = vst.msk [vmem:[#allocation3 + $0x28] sm:$0xff] %vm773, %v762
        %780 = vst.msk [vmem:[#allocation3 + $0x30] sm:$0xff] %vm773, %v763
        %781 = vst.msk [vmem:[#allocation3 + $0x38] sm:$0xff] %vm773, %v764
        %782 = vst.msk [vmem:[#allocation3 + $0x40] sm:$0xff] %vm773, %v765
        %783 = vst.msk [vmem:[#allocation3 + $0x48] sm:$0xff] %vm773, %v766
        %784 = vst.msk [vmem:[#allocation3 + $0x50] sm:$0xff] %vm773, %v767
        %785 = vst.msk [vmem:[#allocation3 + $0x58] sm:$0xff] %vm773, %v768
        %786 = vst.msk [vmem:[#allocation3 + $0x60] sm:$0xff] %vm773, %v769
        %787 = vst.msk [vmem:[#allocation3 + $0x68] sm:$0xff] %vm773, %v770
        %788 = vst.msk [vmem:[#allocation3 + $0x70] sm:$0xff] %vm773, %v771
        %789 = vst.msk [vmem:[#allocation3 + $0x78] sm:$0xff] %vm773, %v772
        %p790 = scmp.eq.s32.totalorder %s28, 2
        // Predicated region
        $region49: #{tpu_custom_call.1} parent=31 // pred_check
          %p791 = pneg %p790
        $region50: #{tpu_custom_call.1} parent=31 // pred_check_branch
          %793 = sbr.rel (%p791) target = $region52
        $region51: #{tpu_custom_call.1} parent=31 // pred_region
          %v794 = vld [vmem:[#allocation3] sm:$0xff]
          %v795 = vld [vmem:[#allocation3 + $0x8] sm:$0xff]
          %v796 = vld [vmem:[#allocation3 + $0x10] sm:$0xff]
          %v797 = vld [vmem:[#allocation3 + $0x18] sm:$0xff]
          %v798 = vld [vmem:[#allocation3 + $0x20] sm:$0xff]
          %v799 = vld [vmem:[#allocation3 + $0x28] sm:$0xff]
          %v800 = vld [vmem:[#allocation3 + $0x30] sm:$0xff]
          %v801 = vld [vmem:[#allocation3 + $0x38] sm:$0xff]
          %v802 = vld [vmem:[#allocation3 + $0x40] sm:$0xff]
          %v803 = vld [vmem:[#allocation3 + $0x48] sm:$0xff]
          %v804 = vld [vmem:[#allocation3 + $0x50] sm:$0xff]
          %v805 = vld [vmem:[#allocation3 + $0x58] sm:$0xff]
          %v806 = vld [vmem:[#allocation3 + $0x60] sm:$0xff]
          %v807 = vld [vmem:[#allocation3 + $0x68] sm:$0xff]
          %v808 = vld [vmem:[#allocation3 + $0x70] sm:$0xff]
          %v809 = vld [vmem:[#allocation3 + $0x78] sm:$0xff]
          %v810 = vadd.f32 %v794, 1.0
          %v811 = vadd.f32 %v795, 1.0
          %v812 = vadd.f32 %v796, 1.0
          %v813 = vadd.f32 %v797, 1.0
          %v814 = vadd.f32 %v798, 1.0
          %v815 = vadd.f32 %v799, 1.0
          %v816 = vadd.f32 %v800, 1.0
          %v817 = vadd.f32 %v801, 1.0
          %v818 = vadd.f32 %v802, 1.0
          %v819 = vadd.f32 %v803, 1.0
          %v820 = vadd.f32 %v804, 1.0
          %v821 = vadd.f32 %v805, 1.0
          %v822 = vadd.f32 %v806, 1.0
          %v823 = vadd.f32 %v807, 1.0
          %v824 = vadd.f32 %v808, 1.0
          %v825 = vadd.f32 %v809, 1.0
          %v826 = vrcp.pop %v810
          %v827 = vmul.f32 %v810, %v826
          %v828 = vsub.f32 1.0, %v827
          %v829 = vmul.f32 %v826, %v828
          %v830 = vadd.f32 %v826, %v829
          %vm831 = vweird.f32 %v810
          %vm832 = vweird.f32 %v826
          %vm833 = vmor %vm831, %vm832
          %v834 = vsel %vm833, %v826, %v830
          %v835 = vand.u32 2147483647, %v810
          %vm836 = vcmp.eq.f32.partialorder %v835, 8.507059e+37
          %v837 = vand.u32 %v810, 2147483648
          %v838 = vor.u32 1.1754944e-38, %v837
          %v839 = vsel %vm836, %v838, %v834
          %v840 = vrcp.pop %v811
          %v841 = vmul.f32 %v811, %v840
          %v842 = vsub.f32 1.0, %v841
          %v843 = vmul.f32 %v840, %v842
          %v844 = vadd.f32 %v840, %v843
          %vm845 = vweird.f32 %v811
          %vm846 = vweird.f32 %v840
          %vm847 = vmor %vm845, %vm846
          %v848 = vsel %vm847, %v840, %v844
          %v849 = vand.u32 2147483647, %v811
          %vm850 = vcmp.eq.f32.partialorder %v849, 8.507059e+37
          %v851 = vand.u32 %v811, 2147483648
          %v852 = vor.u32 1.1754944e-38, %v851
          %v853 = vsel %vm850, %v852, %v848
          %v854 = vrcp.pop %v812
          %v855 = vmul.f32 %v812, %v854
          %v856 = vsub.f32 1.0, %v855
          %v857 = vmul.f32 %v854, %v856
          %v858 = vadd.f32 %v854, %v857
          %vm859 = vweird.f32 %v812
          %vm860 = vweird.f32 %v854
          %vm861 = vmor %vm859, %vm860
          %v862 = vsel %vm861, %v854, %v858
          %v863 = vand.u32 2147483647, %v812
          %vm864 = vcmp.eq.f32.partialorder %v863, 8.507059e+37
          %v865 = vand.u32 %v812, 2147483648
          %v866 = vor.u32 1.1754944e-38, %v865
          %v867 = vsel %vm864, %v866, %v862
          %v868 = vrcp.pop %v813
          %v869 = vmul.f32 %v813, %v868
          %v870 = vsub.f32 1.0, %v869
          %v871 = vmul.f32 %v868, %v870
          %v872 = vadd.f32 %v868, %v871
          %vm873 = vweird.f32 %v813
          %vm874 = vweird.f32 %v868
          %vm875 = vmor %vm873, %vm874
          %v876 = vsel %vm875, %v868, %v872
          %v877 = vand.u32 2147483647, %v813
          %vm878 = vcmp.eq.f32.partialorder %v877, 8.507059e+37
          %v879 = vand.u32 %v813, 2147483648
          %v880 = vor.u32 1.1754944e-38, %v879
          %v881 = vsel %vm878, %v880, %v876
          %v882 = vrcp.pop %v814
          %v883 = vmul.f32 %v814, %v882
          %v884 = vsub.f32 1.0, %v883
          %v885 = vmul.f32 %v882, %v884
          %v886 = vadd.f32 %v882, %v885
          %vm887 = vweird.f32 %v814
          %vm888 = vweird.f32 %v882
          %vm889 = vmor %vm887, %vm888
          %v890 = vsel %vm889, %v882, %v886
          %v891 = vand.u32 2147483647, %v814
          %vm892 = vcmp.eq.f32.partialorder %v891, 8.507059e+37
          %v893 = vand.u32 %v814, 2147483648
          %v894 = vor.u32 1.1754944e-38, %v893
          %v895 = vsel %vm892, %v894, %v890
          %v896 = vrcp.pop %v815
          %v897 = vmul.f32 %v815, %v896
          %v898 = vsub.f32 1.0, %v897
          %v899 = vmul.f32 %v896, %v898
          %v900 = vadd.f32 %v896, %v899
          %vm901 = vweird.f32 %v815
          %vm902 = vweird.f32 %v896
          %vm903 = vmor %vm901, %vm902
          %v904 = vsel %vm903, %v896, %v900
          %v905 = vand.u32 2147483647, %v815
          %vm906 = vcmp.eq.f32.partialorder %v905, 8.507059e+37
          %v907 = vand.u32 %v815, 2147483648
          %v908 = vor.u32 1.1754944e-38, %v907
          %v909 = vsel %vm906, %v908, %v904
          %v910 = vrcp.pop %v816
          %v911 = vmul.f32 %v816, %v910
          %v912 = vsub.f32 1.0, %v911
          %v913 = vmul.f32 %v910, %v912
          %v914 = vadd.f32 %v910, %v913
          %vm915 = vweird.f32 %v816
          %vm916 = vweird.f32 %v910
          %vm917 = vmor %vm915, %vm916
          %v918 = vsel %vm917, %v910, %v914
          %v919 = vand.u32 2147483647, %v816
          %vm920 = vcmp.eq.f32.partialorder %v919, 8.507059e+37
          %v921 = vand.u32 %v816, 2147483648
          %v922 = vor.u32 1.1754944e-38, %v921
          %v923 = vsel %vm920, %v922, %v918
          %v924 = vrcp.pop %v817
          %v925 = vmul.f32 %v817, %v924
          %v926 = vsub.f32 1.0, %v925
          %v927 = vmul.f32 %v924, %v926
          %v928 = vadd.f32 %v924, %v927
          %vm929 = vweird.f32 %v817
          %vm930 = vweird.f32 %v924
          %vm931 = vmor %vm929, %vm930
          %v932 = vsel %vm931, %v924, %v928
          %v933 = vand.u32 2147483647, %v817
          %vm934 = vcmp.eq.f32.partialorder %v933, 8.507059e+37
          %v935 = vand.u32 %v817, 2147483648
          %v936 = vor.u32 1.1754944e-38, %v935
          %v937 = vsel %vm934, %v936, %v932
          %v938 = vrcp.pop %v818
          %v939 = vmul.f32 %v818, %v938
          %v940 = vsub.f32 1.0, %v939
          %v941 = vmul.f32 %v938, %v940
          %v942 = vadd.f32 %v938, %v941
          %vm943 = vweird.f32 %v818
          %vm944 = vweird.f32 %v938
          %vm945 = vmor %vm943, %vm944
          %v946 = vsel %vm945, %v938, %v942
          %v947 = vand.u32 2147483647, %v818
          %vm948 = vcmp.eq.f32.partialorder %v947, 8.507059e+37
          %v949 = vand.u32 %v818, 2147483648
          %v950 = vor.u32 1.1754944e-38, %v949
          %v951 = vsel %vm948, %v950, %v946
          %v952 = vrcp.pop %v819
          %v953 = vmul.f32 %v819, %v952
          %v954 = vsub.f32 1.0, %v953
          %v955 = vmul.f32 %v952, %v954
          %v956 = vadd.f32 %v952, %v955
          %vm957 = vweird.f32 %v819
          %vm958 = vweird.f32 %v952
          %vm959 = vmor %vm957, %vm958
          %v960 = vsel %vm959, %v952, %v956
          %v961 = vand.u32 2147483647, %v819
          %vm962 = vcmp.eq.f32.partialorder %v961, 8.507059e+37
          %v963 = vand.u32 %v819, 2147483648
          %v964 = vor.u32 1.1754944e-38, %v963
          %v965 = vsel %vm962, %v964, %v960
          %v966 = vrcp.pop %v820
          %v967 = vmul.f32 %v820, %v966
          %v968 = vsub.f32 1.0, %v967
          %v969 = vmul.f32 %v966, %v968
          %v970 = vadd.f32 %v966, %v969
          %vm971 = vweird.f32 %v820
          %vm972 = vweird.f32 %v966
          %vm973 = vmor %vm971, %vm972
          %v974 = vsel %vm973, %v966, %v970
          %v975 = vand.u32 2147483647, %v820
          %vm976 = vcmp.eq.f32.partialorder %v975, 8.507059e+37
          %v977 = vand.u32 %v820, 2147483648
          %v978 = vor.u32 1.1754944e-38, %v977
          %v979 = vsel %vm976, %v978, %v974
          %v980 = vrcp.pop %v821
          %v981 = vmul.f32 %v821, %v980
          %v982 = vsub.f32 1.0, %v981
          %v983 = vmul.f32 %v980, %v982
          %v984 = vadd.f32 %v980, %v983
          %vm985 = vweird.f32 %v821
          %vm986 = vweird.f32 %v980
          %vm987 = vmor %vm985, %vm986
          %v988 = vsel %vm987, %v980, %v984
          %v989 = vand.u32 2147483647, %v821
          %vm990 = vcmp.eq.f32.partialorder %v989, 8.507059e+37
          %v991 = vand.u32 %v821, 2147483648
          %v992 = vor.u32 1.1754944e-38, %v991
          %v993 = vsel %vm990, %v992, %v988
          %v994 = vrcp.pop %v822
          %v995 = vmul.f32 %v822, %v994
          %v996 = vsub.f32 1.0, %v995
          %v997 = vmul.f32 %v994, %v996
          %v998 = vadd.f32 %v994, %v997
          %vm999 = vweird.f32 %v822
          %vm1000 = vweird.f32 %v994
          %vm1001 = vmor %vm999, %vm1000
          %v1002 = vsel %vm1001, %v994, %v998
          %v1003 = vand.u32 2147483647, %v822
          %vm1004 = vcmp.eq.f32.partialorder %v1003, 8.507059e+37
          %v1005 = vand.u32 %v822, 2147483648
          %v1006 = vor.u32 1.1754944e-38, %v1005
          %v1007 = vsel %vm1004, %v1006, %v1002
          %v1008 = vrcp.pop %v823
          %v1009 = vmul.f32 %v823, %v1008
          %v1010 = vsub.f32 1.0, %v1009
          %v1011 = vmul.f32 %v1008, %v1010
          %v1012 = vadd.f32 %v1008, %v1011
          %vm1013 = vweird.f32 %v823
          %vm1014 = vweird.f32 %v1008
          %vm1015 = vmor %vm1013, %vm1014
          %v1016 = vsel %vm1015, %v1008, %v1012
          %v1017 = vand.u32 2147483647, %v823
          %vm1018 = vcmp.eq.f32.partialorder %v1017, 8.507059e+37
          %v1019 = vand.u32 %v823, 2147483648
          %v1020 = vor.u32 1.1754944e-38, %v1019
          %v1021 = vsel %vm1018, %v1020, %v1016
          %v1022 = vrcp.pop %v824
          %v1023 = vmul.f32 %v824, %v1022
          %v1024 = vsub.f32 1.0, %v1023
          %v1025 = vmul.f32 %v1022, %v1024
          %v1026 = vadd.f32 %v1022, %v1025
          %vm1027 = vweird.f32 %v824
          %vm1028 = vweird.f32 %v1022
          %vm1029 = vmor %vm1027, %vm1028
          %v1030 = vsel %vm1029, %v1022, %v1026
          %v1031 = vand.u32 2147483647, %v824
          %vm1032 = vcmp.eq.f32.partialorder %v1031, 8.507059e+37
          %v1033 = vand.u32 %v824, 2147483648
          %v1034 = vor.u32 1.1754944e-38, %v1033
          %v1035 = vsel %vm1032, %v1034, %v1030
          %v1036 = vrcp.pop %v825
          %v1037 = vmul.f32 %v825, %v1036
          %v1038 = vsub.f32 1.0, %v1037
          %v1039 = vmul.f32 %v1036, %v1038
          %v1040 = vadd.f32 %v1036, %v1039
          %vm1041 = vweird.f32 %v825
          %vm1042 = vweird.f32 %v1036
          %vm1043 = vmor %vm1041, %vm1042
          %v1044 = vsel %vm1043, %v1036, %v1040
          %v1045 = vand.u32 2147483647, %v825
          %vm1046 = vcmp.eq.f32.partialorder %v1045, 8.507059e+37
          %v1047 = vand.u32 %v825, 2147483648
          %v1048 = vor.u32 1.1754944e-38, %v1047
          %v1049 = vsel %vm1046, %v1048, %v1044
          %v1050 = vld [vmem:[#allocation2] sm:$0xff]
          %v1051 = vld [vmem:[#allocation2 + $0x8] sm:$0xff]
          %v1052 = vld [vmem:[#allocation2 + $0x10] sm:$0xff]
          %v1053 = vld [vmem:[#allocation2 + $0x18] sm:$0xff]
          %v1054 = vld [vmem:[#allocation2 + $0x20] sm:$0xff]
          %v1055 = vld [vmem:[#allocation2 + $0x28] sm:$0xff]
          %v1056 = vld [vmem:[#allocation2 + $0x30] sm:$0xff]
          %v1057 = vld [vmem:[#allocation2 + $0x38] sm:$0xff]
          %v1058 = vld [vmem:[#allocation2 + $0x40] sm:$0xff]
          %v1059 = vld [vmem:[#allocation2 + $0x48] sm:$0xff]
          %v1060 = vld [vmem:[#allocation2 + $0x50] sm:$0xff]
          %v1061 = vld [vmem:[#allocation2 + $0x58] sm:$0xff]
          %v1062 = vld [vmem:[#allocation2 + $0x60] sm:$0xff]
          %v1063 = vld [vmem:[#allocation2 + $0x68] sm:$0xff]
          %v1064 = vld [vmem:[#allocation2 + $0x70] sm:$0xff]
          %v1065 = vld [vmem:[#allocation2 + $0x78] sm:$0xff]
          %v1066 = vld [vmem:[%s245] sm:$0xff]
          %v1067 = vld [vmem:[%s245 + $0x8] sm:$0xff]
          %v1068 = vld [vmem:[%s245 + $0x10] sm:$0xff]
          %v1069 = vld [vmem:[%s245 + $0x18] sm:$0xff]
          %v1070 = vld [vmem:[%s245 + $0x20] sm:$0xff]
          %v1071 = vld [vmem:[%s245 + $0x28] sm:$0xff]
          %v1072 = vld [vmem:[%s245 + $0x30] sm:$0xff]
          %v1073 = vld [vmem:[%s245 + $0x38] sm:$0xff]
          %v1074 = vld [vmem:[%s245 + $0x40] sm:$0xff]
          %v1075 = vld [vmem:[%s245 + $0x48] sm:$0xff]
          %v1076 = vld [vmem:[%s245 + $0x50] sm:$0xff]
          %v1077 = vld [vmem:[%s245 + $0x58] sm:$0xff]
          %v1078 = vld [vmem:[%s245 + $0x60] sm:$0xff]
          %v1079 = vld [vmem:[%s245 + $0x68] sm:$0xff]
          %v1080 = vld [vmem:[%s245 + $0x70] sm:$0xff]
          %v1081 = vld [vmem:[%s245 + $0x78] sm:$0xff]
          %v1082 = vadd.f32 %v1050, %v1066
          %v1083 = vadd.f32 %v1051, %v1067
          %v1084 = vadd.f32 %v1052, %v1068
          %v1085 = vadd.f32 %v1053, %v1069
          %v1086 = vadd.f32 %v1054, %v1070
          %v1087 = vadd.f32 %v1055, %v1071
          %v1088 = vadd.f32 %v1056, %v1072
          %v1089 = vadd.f32 %v1057, %v1073
          %v1090 = vadd.f32 %v1058, %v1074
          %v1091 = vadd.f32 %v1059, %v1075
          %v1092 = vadd.f32 %v1060, %v1076
          %v1093 = vadd.f32 %v1061, %v1077
          %v1094 = vadd.f32 %v1062, %v1078
          %v1095 = vadd.f32 %v1063, %v1079
          %v1096 = vadd.f32 %v1064, %v1080
          %v1097 = vadd.f32 %v1065, %v1081
          %1099 = vset.pattern.permute.xlu0 0
          %1100 = vperm.xlu0 %1099, %v839
          %v1101 = vpop.permute.xlu0 %1100
          %1104 = vset.pattern.permute.xlu0 0
          %1105 = vperm.xlu0 %1104, %v853
          %v1106 = vpop.permute.xlu0 %1105
          %1109 = vset.pattern.permute.xlu0 0
          %1110 = vperm.xlu0 %1109, %v867
          %v1111 = vpop.permute.xlu0 %1110
          %1114 = vset.pattern.permute.xlu0 0
          %1115 = vperm.xlu0 %1114, %v881
          %v1116 = vpop.permute.xlu0 %1115
          %1119 = vset.pattern.permute.xlu0 0
          %1120 = vperm.xlu0 %1119, %v895
          %v1121 = vpop.permute.xlu0 %1120
          %1124 = vset.pattern.permute.xlu0 0
          %1125 = vperm.xlu0 %1124, %v909
          %v1126 = vpop.permute.xlu0 %1125
          %1129 = vset.pattern.permute.xlu0 0
          %1130 = vperm.xlu0 %1129, %v923
          %v1131 = vpop.permute.xlu0 %1130
          %1134 = vset.pattern.permute.xlu0 0
          %1135 = vperm.xlu0 %1134, %v937
          %v1136 = vpop.permute.xlu0 %1135
          %1139 = vset.pattern.permute.xlu0 0
          %1140 = vperm.xlu0 %1139, %v951
          %v1141 = vpop.permute.xlu0 %1140
          %1144 = vset.pattern.permute.xlu0 0
          %1145 = vperm.xlu0 %1144, %v965
          %v1146 = vpop.permute.xlu0 %1145
          %1149 = vset.pattern.permute.xlu0 0
          %1150 = vperm.xlu0 %1149, %v979
          %v1151 = vpop.permute.xlu0 %1150
          %1154 = vset.pattern.permute.xlu0 0
          %1155 = vperm.xlu0 %1154, %v993
          %v1156 = vpop.permute.xlu0 %1155
          %1159 = vset.pattern.permute.xlu0 0
          %1160 = vperm.xlu0 %1159, %v1007
          %v1161 = vpop.permute.xlu0 %1160
          %1164 = vset.pattern.permute.xlu0 0
          %1165 = vperm.xlu0 %1164, %v1021
          %v1166 = vpop.permute.xlu0 %1165
          %1169 = vset.pattern.permute.xlu0 0
          %1170 = vperm.xlu0 %1169, %v1035
          %v1171 = vpop.permute.xlu0 %1170
          %1174 = vset.pattern.permute.xlu0 0
          %1175 = vperm.xlu0 %1174, %v1049
          %v1176 = vpop.permute.xlu0 %1175
          %v1178 = vmul.f32 %v1082, %v1101
          %v1179 = vmul.f32 %v1083, %v1106
          %v1180 = vmul.f32 %v1084, %v1111
          %v1181 = vmul.f32 %v1085, %v1116
          %v1182 = vmul.f32 %v1086, %v1121
          %v1183 = vmul.f32 %v1087, %v1126
          %v1184 = vmul.f32 %v1088, %v1131
          %v1185 = vmul.f32 %v1089, %v1136
          %v1186 = vmul.f32 %v1090, %v1141
          %v1187 = vmul.f32 %v1091, %v1146
          %v1188 = vmul.f32 %v1092, %v1151
          %v1189 = vmul.f32 %v1093, %v1156
          %v1190 = vmul.f32 %v1094, %v1161
          %v1191 = vmul.f32 %v1095, %v1166
          %v1192 = vmul.f32 %v1096, %v1171
          %v1193 = vmul.f32 %v1097, %v1176
          %1194 = vst [vmem:[%s288] sm:$0xff] %v1178
          %1195 = vst [vmem:[%s288 + $0x8] sm:$0xff] %v1179
          %1196 = vst [vmem:[%s288 + $0x10] sm:$0xff] %v1180
          %1197 = vst [vmem:[%s288 + $0x18] sm:$0xff] %v1181
          %1198 = vst [vmem:[%s288 + $0x20] sm:$0xff] %v1182
          %1199 = vst [vmem:[%s288 + $0x28] sm:$0xff] %v1183
          %1200 = vst [vmem:[%s288 + $0x30] sm:$0xff] %v1184
          %1201 = vst [vmem:[%s288 + $0x38] sm:$0xff] %v1185
          %1202 = vst [vmem:[%s288 + $0x40] sm:$0xff] %v1186
          %1203 = vst [vmem:[%s288 + $0x48] sm:$0xff] %v1187
          %1204 = vst [vmem:[%s288 + $0x50] sm:$0xff] %v1188
          %1205 = vst [vmem:[%s288 + $0x58] sm:$0xff] %v1189
          %1206 = vst [vmem:[%s288 + $0x60] sm:$0xff] %v1190
          %1207 = vst [vmem:[%s288 + $0x68] sm:$0xff] %v1191
          %1208 = vst [vmem:[%s288 + $0x70] sm:$0xff] %v1192
          %1209 = vst [vmem:[%s288 + $0x78] sm:$0xff] %v1193
        $region52: #{tpu_custom_call.1} parent=31 // pred_fallthru
          _
        %s1210 = sand.u32 %s123, 1
        %s1211 = scalar_lea.sflag [#allocation6], %s1210
        %s1212 = sand.u32 %s123, 1
        %s1213 = smul.addr %s1212, 128
        %s1214 = scalar_lea.vmem [#allocation10], %s1213
        // Predicated region
        $region53: #{tpu_custom_call.1} parent=31 // pred_check
          %p1215 = pneg %p133
        $region54: #{tpu_custom_call.1} parent=31 // pred_check_branch
          %1217 = sbr.rel (%p1215) target = $region56
        $region55: #{tpu_custom_call.1} parent=31 // pred_region
          %s1218 = smul.u32 16, %s27
          %1220 = vsyncadd %s1211, 0
          %s1221 = smul.addr %s1218, 8
          %s1222 = scalar_lea.hbm %s3, %s1221
          %s1223 = sshll.u32 %s1214, 4
          %s1224 = int_to_ptr.vmem [resolvable:$true] %s1223
          %s1225 = sshll.u32 %s1222, 4
          %s1226 = int_to_ptr.hbm [resolvable:$true] %s1225
          %1231 = dma.vmem_to_hbm [thread:$0]  %s1224, 2048, %s1226, %s1211, 128, 128, 8
        $region56: #{tpu_custom_call.1} parent=31 // pred_fallthru
          _
      $region32: #{tpu_custom_call.1} parent=5 // pred_fallthru
        _
      %p1232 = scmp.le.s32.totalorder 2, %s18
      // Predicated region
      $region57: #{tpu_custom_call.1} parent=5 // pred_check
        %p1233 = pneg %p1232
      $region58: #{tpu_custom_call.1} parent=5 // pred_check_branch
        %1235 = sbr.rel (%p1233) target = $region60
      $region59: #{tpu_custom_call.1} parent=5 // pred_region
        %s1236 = ssub.s32 %s18, 2
        // Predicated region
        $region61: #{tpu_custom_call.1} parent=59 // pred_check
          %p1237 = pneg %p139
        $region62: #{tpu_custom_call.1} parent=59 // pred_check_branch
          %1239 = sbr.rel (%p1237) target = $region64
        $region63: #{tpu_custom_call.1} parent=59 // pred_region
          %s1240 = sand.u32 %s124, 1
          %s1241 = scalar_lea.sflag [#allocation6], %s1240
          %s1242 = sand.u32 %s124, 1
          %s1243 = smul.addr %s1242, 128
          %s1244 = scalar_lea.vmem [#allocation10], %s1243
          %1246 = dma.done %s1241, 2048
        $region64: #{tpu_custom_call.1} parent=59 // pred_fallthru
          _
      $region60: #{tpu_custom_call.1} parent=5 // pred_fallthru
        _
    $region6: #{tpu_custom_call.1} parent=1 // loop_footer
      %s22 = sadd.s32 1, %s18
    $region7: #{tpu_custom_call.1} parent=1 // loop_footer_branch
      %17 = sbr.rel target = $region3
    $region8: #{tpu_custom_call.1} parent=1 // loop_exit
      _
    %1247 = vsyncpa [#allocation5], 1
    %s1248 = scalar_lea.sflag [#allocation5], 1
    %1249 = vsyncpa %s1248, 1
    %1250 = vsyncpa [#allocation8], 1
    %s1251 = scalar_lea.sflag [#allocation8], 1
    %1252 = vsyncpa %s1251, 1
    %1253 = vsyncpa [#allocation6], 1
    %s1254 = scalar_lea.sflag [#allocation6], 1
    %1255 = vsyncpa %s1254, 1

</llo_original>
